<compile_context>
chip_gen: v5e
topology: v5e:2x2
jax: 0.10.0
libtpu: 0.0.40
codegen_flags: <defaults>
</compile_context>

<pallas_src>
import functools

import jax
import jax.numpy as jnp
from jax.experimental import pallas as pl
from jax.experimental.pallas import tpu as pltpu


# ----------------------------------------------------------------------------
# small helpers
# ----------------------------------------------------------------------------
def _round_up(x, m):
    return (x + m - 1) // m * m


@functools.lru_cache(maxsize=None)
def _num_tensorcores_per_chip():
    """1 on v5e/v6e (single TensorCore per chip), 2 on v7x; defaults to 1."""
    try:
        info = pltpu.get_tpu_info()
        for attr in ("num_cores", "core_count", "num_tensorcores"):
            v = getattr(info, attr, None)
            if isinstance(v, int) and v in (1, 2):
                return v
    except Exception:
        pass
    try:
        if "v7" in jax.devices()[0].device_kind.lower():
            return 2
    except Exception:
        pass
    return 1


def _grid_split(n_rows, sublane, n_groups=None):
    """2 grid steps only when the chip has 2 TensorCores AND the split block
    stays dtype-tile-aligned (bf16 needs a multiple of 16 sublanes) AND the
    split lands on group (image) boundaries; otherwise 1 (a grid is a serial
    loop on single-TC chips — pure overhead)."""
    if _num_tensorcores_per_chip() < 2:
        return 1
    if n_rows % 2 != 0 or (n_rows // 2) % sublane != 0:
        return 1
    if n_groups is not None and n_groups % 2 != 0:
        return 1
    return 2


# ----------------------------------------------------------------------------
# Pallas kernel bodies
# ----------------------------------------------------------------------------
def _fused_kernel(a0_ref, a1_ref, a2_ref, w2_ref, b2_ref, w3_ref, b3_ref,
                  wc_ref, bc_ref, l2_ref, l3_ref, clf_ref, *, rows_per_img):
    """layer2 (3x3/s2) -> layer3 (3x3/s2) -> 1x1 clf, all in VMEM.

    a*_ref : (3, Mb, L1) bf16 — dy=0/1/2 row taps for three layer2 output-row
             groups (slot 0: even l2 rows, 1: odd l2 rows, 2: shifted-odd).
    w2_ref : (3, L1, K2) bf16 block-structured stride-2 weights.
    w3_ref : (3, K2, K3) bf16.        wc_ref : (K3, Kc) bf16 block-diagonal.
    b*_ref : (1, K) f32 lane-tiled biases.
    """
    mb = a0_ref.shape[1]
    l1 = a0_ref.shape[2]
    k2 = w2_ref.shape[2]

    # ---- layer2: one 3-tap row-GEMM over all three row groups (M = 3*Mb) ---
    a0 = a0_ref[...].reshape(3 * mb, l1)
    a1 = a1_ref[...].reshape(3 * mb, l1)
    a2 = a2_ref[...].reshape(3 * mb, l1)
    acc2 = jnp.dot(a0, w2_ref[0], preferred_element_type=jnp.float32)
    acc2 = acc2 + jnp.dot(a1, w2_ref[1], preferred_element_type=jnp.float32)
    acc2 = acc2 + jnp.dot(a2, w2_ref[2], preferred_element_type=jnp.float32)
    act2 = jnp.maximum(acc2 + b2_ref[...], 0.0)              # (3*Mb, K2) f32

    even2 = act2[:mb]          # l2 rows 2j    -> layer3 dy=1 operand
    odd2 = act2[mb:2 * mb]     # l2 rows 2j+1  -> layer3 dy=2 operand
    odd2s = act2[2 * mb:]      # l2 rows 2j-1  -> layer3 dy=0 operand
    # j = 0 of the shifted group is layer3's zero padding, not a conv output
    # (it came out as relu(b2) from all-zero input rows): force exact zero.
    ridx = jax.lax.broadcasted_iota(jnp.int32, (mb, k2), 0)
    odd2s = jnp.where(ridx % rows_per_img == 0, 0.0, odd2s)

    l2_ref[0] = even2.astype(l2_ref.dtype)
    l2_ref[1] = odd2.astype(l2_ref.dtype)

    # ---- layer3: 3-tap row-GEMM on the in-VMEM l2 activation ---------------
    acc3 = jnp.dot(odd2s.astype(jnp.bfloat16), w3_ref[0],
                   preferred_element_type=jnp.float32)
    acc3 = acc3 + jnp.dot(even2.astype(jnp.bfloat16), w3_ref[1],
                          preferred_element_type=jnp.float32)
    acc3 = acc3 + jnp.dot(odd2.astype(jnp.bfloat16), w3_ref[2],
                          preferred_element_type=jnp.float32)
    l3 = jnp.maximum(acc3 + b3_ref[...], 0.0)                 # (Mb, K3) f32
    l3_ref[...] = l3.astype(l3_ref.dtype)

    # ---- 1x1 classification conv on the in-VMEM l3 activation --------------
    clf = jnp.dot(l3.astype(jnp.bfloat16), wc_ref[...],
                  preferred_element_type=jnp.float32)
    clf_ref[...] = jnp.maximum(clf + bc_ref[...], 0.0).astype(clf_ref.dtype)


def _pointwise_kernel(x_ref, w_ref, b_ref, o_ref):
    acc = jnp.dot(x_ref[...], w_ref[...], preferred_element_type=jnp.float32)
    o_ref[...] = jnp.maximum(acc + b_ref[...], 0.0).astype(o_ref.dtype)


# ----------------------------------------------------------------------------
# weight / input packing (weights packed once in __init__; inputs per forward)
# ----------------------------------------------------------------------------
def _conv_row_weights(w, w_in, lanes=None):
    """(Cout,Cin,3,3) -> (3, W*Cin [padded to `lanes`], (W//2)*Cout) bf16
    block-structured matrices.  Width borders live in the zero pattern:
    B[dy][wu*Cin+c, wo*Cout+co] = w[co,c,dy, wu-2*wo+1] when 0<=wu-2*wo+1<3."""
    cout, cin, kh, kw = w.shape
    wo = w_in // 2
    L = w_in * cin
    w_t = jnp.transpose(w, (2, 3, 1, 0))                       # (kh,kw,Cin,Cout)
    dx = jnp.arange(w_in)[:, None] - 2 * jnp.arange(wo)[None, :] + 1
    valid = ((dx >= 0) & (dx < kw)).astype(w.dtype)
    b = w_t[:, jnp.clip(dx, 0, kw - 1)]                        # (kh,W,Wo,Cin,Cout)
    b = b * valid[None, :, :, None, None]
    b = jnp.transpose(b, (0, 1, 3, 2, 4)).reshape(kh, L, wo * cout)
    if lanes is not None and lanes > L:
        b = jnp.pad(b, ((0, 0), (0, lanes - L), (0, 0)))
    return b.astype(jnp.bfloat16)


def _pointwise_row_weight(wc, w_sp):
    """(Cf, C, 1, 1) -> block-diagonal (W*C, W*Cf) bf16 acting on packed rows."""
    cf, c = wc.shape[0], wc.shape[1]
    wmat = wc.reshape(cf, c).T.astype(jnp.float32)              # (C, Cf)
    eye = jnp.eye(w_sp, dtype=jnp.float32)
    d = (eye[:, None, :, None] * wmat[None, :, None, :]).reshape(
        w_sp * c, w_sp * cf)
    return d.astype(jnp.bfloat16)


def _tile_bias(b, w_sp):
    return jnp.tile(b.astype(jnp.float32), w_sp).reshape(1, -1)


def _prep_layer2_rows(x_nhwc, lanes):
    """Gather the stride-2 3x3 row operands for layer2, folding both the
    layer2-output parity split and layer3's shifted-odd row group into the
    gather so the kernel never shifts across sublanes.

    Returns a0, a1, a2 of shape (3, N*(H//4), lanes) bf16; slot
      0: rows feeding even l2 output rows (ho1 = 2j)
      1: rows feeding odd  l2 output rows (ho1 = 2j+1)
      2: rows feeding the shifted-odd group (ho1 = 2j-1; zeros for j=0)
    a0/a1/a2 are the dy=0/1/2 taps (input rows 2*ho1-1 / 2*ho1 / 2*ho1+1).
    """
    n, h, w, c = x_nhwc.shape
    rpi = h // 4
    l_in = w * c
    xr = x_nhwc.reshape(n, h, l_in).astype(jnp.bfloat16)
    if lanes > l_in:
        xr = jnp.pad(xr, ((0, 0), (0, 0), (0, lanes - l_in)))
    # 3 zero rows in front so negative row indices read zeros
    xz = jnp.concatenate([jnp.zeros((n, 3, lanes), xr.dtype), xr], axis=1)
    j = jnp.arange(rpi)
    base = jnp.stack([4 * j - 1, 4 * j + 1, 4 * j - 3])         # dy=0 row / slot

    def take(rows):
        g = xz[:, rows + 3]                                     # (N,3,rpi,lanes)
        return jnp.transpose(g, (1, 0, 2, 3)).reshape(3, n * rpi, lanes)

    return take(base), take(base + 1), take(base + 2)


# ----------------------------------------------------------------------------
# pallas_call wrappers
# ----------------------------------------------------------------------------
def _fused_backbone_clf(a0, a1, a2, packed, *, n_img, rows_per_img):
    m = n_img * rows_per_img
    l1 = a0.shape[-1]
    k2 = packed["w2row"].shape[-1]
    k3 = packed["w3row"].shape[-1]
    kc = packed["wcrow"].shape[-1]
    g = _grid_split(m, 16, n_groups=n_img)
    mb = m // g
    kernel = functools.partial(_fused_kernel, rows_per_img=rows_per_img)
    return pl.pallas_call(
        kernel,
        out_shape=(jax.ShapeDtypeStruct((2, m, k2), jnp.bfloat16),   # l2 packed
                   jax.ShapeDtypeStruct((m, k3), jnp.bfloat16),      # l3 rows
                   jax.ShapeDtypeStruct((m, kc), jnp.float32)),      # clf rows
        grid=(g,),
        in_specs=[
            pl.BlockSpec((3, mb, l1), lambda i: (0, i, 0)),
            pl.BlockSpec((3, mb, l1), lambda i: (0, i, 0)),
            pl.BlockSpec((3, mb, l1), lambda i: (0, i, 0)),
            pl.BlockSpec((3, l1, k2), lambda i: (0, 0, 0)),
            pl.BlockSpec((1, k2), lambda i: (0, 0)),
            pl.BlockSpec((3, k2, k3), lambda i: (0, 0, 0)),
            pl.BlockSpec((1, k3), lambda i: (0, 0)),
            pl.BlockSpec((k3, kc), lambda i: (0, 0)),
            pl.BlockSpec((1, kc), lambda i: (0, 0)),
        ],
        out_specs=(
            pl.BlockSpec((2, mb, k2), lambda i: (0, i, 0)),
            pl.BlockSpec((mb, k3), lambda i: (i, 0)),
            pl.BlockSpec((mb, kc), lambda i: (i, 0)),
        ),
        compiler_params=pltpu.CompilerParams(
            dimension_semantics=("parallel",),
            vmem_limit_bytes=32 * 1024 * 1024),
    )(a0, a1, a2, packed["w2row"], packed["b2row"], packed["w3row"],
      packed["b3row"], packed["wcrow"], packed["bcrow"])


@jax.jit
def pointwise_conv_relu(x_nhwc, wcrow, bcrow):
    """Standalone 1x1 conv + bias + ReLU (extract_classification_feat path)."""
    n, h, w, c = x_nhwc.shape
    assert w * c == wcrow.shape[0], "feature width mismatch vs packed weight"
    kc = bcrow.shape[-1]
    cf = kc // w
    m = n * h
    x_rows = x_nhwc.reshape(m, w * c).astype(jnp.bfloat16)
    g = _grid_split(m, 16)
    mb = m // g
    out = pl.pallas_call(
        _pointwise_kernel,
        out_shape=jax.ShapeDtypeStruct((m, kc), jnp.float32),
        grid=(g,),
        in_specs=[
            pl.BlockSpec((mb, w * c), lambda i: (i, 0)),
            pl.BlockSpec((w * c, kc), lambda i: (0, 0)),
            pl.BlockSpec((1, kc), lambda i: (0, 0)),
        ],
        out_specs=pl.BlockSpec((mb, kc), lambda i: (i, 0)),
        compiler_params=pltpu.CompilerParams(
            dimension_semantics=("parallel",),
            vmem_limit_bytes=32 * 1024 * 1024),
    )(x_rows, wcrow, bcrow)
    return out.reshape(n, h, w, cf)


# ----------------------------------------------------------------------------
# plain-JAX glue (jitted)
# ----------------------------------------------------------------------------
@jax.jit
def _forward_features(packed, im_nchw):
    """One NCHW->NHWC transpose, one fused pallas_call, thin unpacking."""
    n, _, h, w = im_nchw.shape
    x = jnp.transpose(im_nchw, (0, 2, 3, 1))
    rpi = h // 4
    a0, a1, a2 = _prep_layer2_rows(x, packed["w2row"].shape[1])
    l2p, l3p, clfp = _fused_backbone_clf(a0, a1, a2, packed,
                                         n_img=n, rows_per_img=rpi)
    wo1, wo2 = w // 2, w // 4
    c2 = packed["b2row"].shape[-1] // wo1
    c3 = packed["b3row"].shape[-1] // wo2
    cf = packed["bcrow"].shape[-1] // wo2
    # l2 comes back parity-packed: [parity, n, j, wo1, c] with ho1 = 2j+parity
    l2 = jnp.transpose(l2p.reshape(2, n, rpi, wo1, c2),
                       (1, 2, 0, 3, 4)).reshape(n, h // 2, wo1, c2)
    l3 = l3p.reshape(n, rpi, wo2, c3)
    clf = clfp.reshape(n, rpi, wo2, cf)
    return l2, l3, clf


def _gaussian_label(train_bb, feat_hw, total_stride, sigma=1.0):
    """train_bb: (n_img, n_seq, 4) [x,y,w,h] -> label (n_img, n_seq, H, W)."""
    h, w = feat_hw
    cx = (train_bb[..., 0] + 0.5 * train_bb[..., 2]) / total_stride
    cy = (train_bb[..., 1] + 0.5 * train_bb[..., 3]) / total_stride
    ys = jnp.arange(h, dtype=jnp.float32)[:, None]
    xs = jnp.arange(w, dtype=jnp.float32)[None, :]
    d2 = (ys[None, None] - cy[..., None, None]) ** 2 + \
         (xs[None, None] - cx[..., None, None]) ** 2
    return jnp.exp(-d2 / (2.0 * sigma ** 2))


@jax.jit
def _train_classifier_impl(packed, train_imgs, train_bb, total_stride):
    """Fused conv kernel + label-weighted filter init (einsum, no extra
    pallas dispatch / feat_rows HBM round-trip)."""
    n_img, n_seq = train_imgs.shape[0], train_imgs.shape[1]
    im = train_imgs.reshape(-1, *train_imgs.shape[-3:])
    _, _, clf = _forward_features(packed, im)                  # (N,h,w,Cf) f32
    h, w, cf = clf.shape[1], clf.shape[2], clf.shape[3]
    label = _gaussian_label(train_bb, (h, w), total_stride)
    clf5 = clf.reshape(n_img, n_seq, h, w, cf)
    num = jnp.einsum("ishw,ishwc->sc", label, clf5)
    den = jnp.sum(label, axis=(0, 2, 3)) + 1e-6
    return (num / den[:, None]).reshape(n_seq, cf, 1, 1)


def _init_params(key):
    k = jax.random.split(key, 6)
    c2, c3, cf = 16, 32, 16
    return {
        # backbone layer2: 3 -> 16, 3x3 stride 2
        "w2": jax.random.normal(k[0], (c2, 3, 3, 3), jnp.float32) * 0.1,
        "b2": jax.random.normal(k[1], (c2,), jnp.float32) * 0.01,
        # backbone layer3: 16 -> 32, 3x3 stride 2
        "w3": jax.random.normal(k[2], (c3, c2, 3, 3), jnp.float32) * 0.1,
        "b3": jax.random.normal(k[3], (c3,), jnp.float32) * 0.01,
        # dimp classification feature extractor: 1x1, 32 -> 16
        "wc": jax.random.normal(k[4], (cf, c3, 1, 1), jnp.float32) * 0.1,
        "bc": jax.random.normal(k[5], (cf,), jnp.float32) * 0.01,
    }


# ----------------------------------------------------------------------------
# LSDiMPNet wrapper (mirrors the PyTorch module's usable methods; NHWC feats)
# ----------------------------------------------------------------------------
class LSDiMPNetPallas:
    def __init__(self, params, classification_layer="layer3",
                 bb_regressor_layer=("layer2", "layer3"), image_size=32):
        self.params = params
        self.classification_layer = classification_layer
        self.bb_regressor_layer = list(bb_regressor_layer)
        self.output_layers = sorted(
            set([classification_layer] + self.bb_regressor_layer))
        self.total_stride = 4                    # two stride-2 convs
        self.image_size = image_size
        # Pack block-structured weights / lane-tiled biases ONCE.
        w_in1 = image_size
        w_in2 = image_size // 2
        w_sp3 = image_size // 4
        cin1 = params["w2"].shape[1]
        self.packed = {
            "w2row": _conv_row_weights(params["w2"], w_in1,
                                       lanes=_round_up(w_in1 * cin1, 128)),
            "b2row": _tile_bias(params["b2"], w_in1 // 2),
            # w3row's K must match the unpadded l2 row width (already 128-mult)
            "w3row": _conv_row_weights(params["w3"], w_in2),
            "b3row": _tile_bias(params["b3"], w_in2 // 2),
            "wcrow": _pointwise_row_weight(params["wc"], w_sp3),
            "bcrow": _tile_bias(params["bc"], w_sp3),
        }

    def forward(self, *args, **kwargs):
        # TODO(synk): forward() is NotImplementedError in the upstream module.
        raise NotImplementedError

    def _features(self, im):
        im = im.reshape(-1, *im.shape[-3:])
        return _forward_features(self.packed, im)

    def extract_backbone_features(self, im, layers=None):
        if layers is None:
            layers = self.output_layers
        l2, l3, _ = self._features(im)
        all_feat = {"layer2": l2, "layer3": l3}
        return {l: all_feat[l] for l in layers}

    def get_backbone_clf_feat(self, backbone_feat):
        return backbone_feat[self.classification_layer]

    def get_backbone_bbreg_feat(self, backbone_feat):
        return [backbone_feat[l] for l in self.bb_regressor_layer]

    def extract_classification_feat(self, backbone_feat):
        feat = self.get_backbone_clf_feat(backbone_feat)        # NHWC
        return pointwise_conv_relu(feat, self.packed["wcrow"],
                                   self.packed["bcrow"])

    def extract_features(self, im, layers):
        l2, l3, clf = self._features(im)
        all_feat = {"layer2": l2, "layer3": l3, "classification": clf}
        return {l: all_feat[l] for l in layers}

    def train_classifier(self, train_imgs, train_bb):
        assert train_imgs.ndim == 5, "Expect 5 dimensions for train"
        return _train_classifier_impl(self.packed, train_imgs, train_bb,
                                      self.total_stride)


# ----------------------------------------------------------------------------
# f32 reference (correctness checking only)
# ----------------------------------------------------------------------------
def _ref_conv(x_nhwc, w, b, stride, pad):
    w_hwio = jnp.transpose(w, (2, 3, 1, 0))
    y = jax.lax.conv_general_dilated(
        x_nhwc, w_hwio, window_strides=(stride, stride),
        padding=[(pad, pad), (pad, pad)],
        dimension_numbers=("NHWC", "HWIO", "NHWC"))
    return jnp.maximum(y + b[None, None, None, :], 0.0)


# ----------------------------------------------------------------------------
if __name__ == "__main__":
    key = jax.random.PRNGKey(0)
    pkey, ikey, bkey = jax.random.split(key, 3)

    params = _init_params(pkey)
    net = LSDiMPNetPallas(params, image_size=32)

    # small shapes: 3 train images, 2 sequences, 3x32x32 RGB frames
    train_imgs = jax.random.normal(ikey, (3, 2, 3, 32, 32), jnp.float32)
    train_bb = jnp.abs(jax.random.normal(bkey, (3, 2, 4), jnp.float32)) * 4.0 + 8.0

    dimp_filter = jax.block_until_ready(net.train_classifier(train_imgs, train_bb))
    assert dimp_filter.shape == (2, 16, 1, 1)
    assert bool(jnp.all(jnp.isfinite(dimp_filter)))

    # standalone feature-extraction path (NHWC features)
    ims = train_imgs.reshape(-1, 3, 32, 32)
    feats = net.extract_backbone_features(ims)
    clf = jax.block_until_ready(net.extract_classification_feat(feats))
    assert feats["layer2"].shape == (6, 16, 16, 16)
    assert feats["layer3"].shape == (6, 8, 8, 32)
    assert clf.shape == (6, 8, 8, 16)

    ef = net.extract_features(ims, ["layer3", "classification"])
    assert ef["classification"].shape == (6, 8, 8, 16)

    # correctness vs f32 XLA reference (loose tol: bf16 MXU operands/outputs)
    x_nhwc = jnp.transpose(ims, (0, 2, 3, 1))
    l2_ref = _ref_conv(x_nhwc, params["w2"], params["b2"], 2, 1)
    l3_ref = _ref_conv(l2_ref, params["w3"], params["b3"], 2, 1)
    clf_ref = _ref_conv(l3_ref, params["wc"], params["bc"], 1, 0)
    assert bool(jnp.allclose(feats["layer2"].astype(jnp.float32), l2_ref,
                             rtol=5e-2, atol=5e-2))
    assert bool(jnp.allclose(feats["layer3"].astype(jnp.float32), l3_ref,
                             rtol=5e-2, atol=5e-2))
    assert bool(jnp.allclose(clf, clf_ref, rtol=5e-2, atol=5e-2))
    assert bool(jnp.allclose(ef["classification"], clf_ref,
                             rtol=5e-2, atol=5e-2))

    lab = _gaussian_label(train_bb, (8, 8), 4)
    clf_ref5 = clf_ref.reshape(3, 2, 8, 8, 16)
    num = jnp.einsum("ishw,ishwc->sc", lab, clf_ref5)
    den = jnp.sum(lab, axis=(0, 2, 3)) + 1e-6
    filt_ref = (num / den[:, None]).reshape(2, 16, 1, 1)
    assert bool(jnp.allclose(dimp_filter, filt_ref, rtol=5e-2, atol=5e-2))

    print("KERNEL_OK")
</pallas_src>

<mosaic_0001>
module attributes {stable_mosaic.version = 11 : i64} {
  func.func @_fused_kernel(%arg0: i32, %arg1: memref<3x48x128xbf16, #tpu.memory_space<vmem>>, %arg2: memref<3x48x128xbf16, #tpu.memory_space<vmem>>, %arg3: memref<3x48x128xbf16, #tpu.memory_space<vmem>>, %arg4: memref<3x128x256xbf16, #tpu.memory_space<vmem>>, %arg5: memref<1x256xf32, #tpu.memory_space<vmem>>, %arg6: memref<3x256x256xbf16, #tpu.memory_space<vmem>>, %arg7: memref<1x256xf32, #tpu.memory_space<vmem>>, %arg8: memref<256x128xbf16, #tpu.memory_space<vmem>>, %arg9: memref<1x128xf32, #tpu.memory_space<vmem>>, %arg10: memref<2x48x256xbf16, #tpu.memory_space<vmem>>, %arg11: memref<48x256xbf16, #tpu.memory_space<vmem>>, %arg12: memref<48x128xf32, #tpu.memory_space<vmem>>) attributes {dimension_semantics = [#tpu.dimension_semantics<parallel>], iteration_bounds = array<i64: 1>, scalar_prefetch = 0 : i64, scratch_operands = 0 : i64, tpu.core_type = #tpu.core_type<tc>, window_params = [{transform_indices = @transform_0, window_bounds = array<i64: 3, 48, 128>}, {transform_indices = @transform_1, window_bounds = array<i64: 3, 48, 128>}, {transform_indices = @transform_2, window_bounds = array<i64: 3, 48, 128>}, {pipeline_mode = #tpu.pipeline_mode<synchronous>, transform_indices = @transform_3, window_bounds = array<i64: 3, 128, 256>}, {pipeline_mode = #tpu.pipeline_mode<synchronous>, transform_indices = @transform_4, window_bounds = array<i64: 1, 256>}, {pipeline_mode = #tpu.pipeline_mode<synchronous>, transform_indices = @transform_5, window_bounds = array<i64: 3, 256, 256>}, {pipeline_mode = #tpu.pipeline_mode<synchronous>, transform_indices = @transform_6, window_bounds = array<i64: 1, 256>}, {pipeline_mode = #tpu.pipeline_mode<synchronous>, transform_indices = @transform_7, window_bounds = array<i64: 256, 128>}, {pipeline_mode = #tpu.pipeline_mode<synchronous>, transform_indices = @transform_8, window_bounds = array<i64: 1, 128>}, {transform_indices = @transform_9, window_bounds = array<i64: 2, 48, 256>}, {transform_indices = @transform_10, window_bounds = array<i64: 48, 256>}, {transform_indices = @transform_11, window_bounds = array<i64: 48, 128>}]} {
    %c0 = arith.constant 0 : index
    %c0_0 = arith.constant 0 : index
    %c0_1 = arith.constant 0 : index
    %0 = vector.load %arg1[%c0, %c0_0, %c0_1] : memref<3x48x128xbf16, #tpu.memory_space<vmem>>, vector<3x48x128xbf16>
    %1 = vector.shape_cast %0 : vector<3x48x128xbf16> to vector<144x128xbf16>
    %c0_2 = arith.constant 0 : index
    %c0_3 = arith.constant 0 : index
    %c0_4 = arith.constant 0 : index
    %2 = vector.load %arg2[%c0_2, %c0_3, %c0_4] : memref<3x48x128xbf16, #tpu.memory_space<vmem>>, vector<3x48x128xbf16>
    %3 = vector.shape_cast %2 : vector<3x48x128xbf16> to vector<144x128xbf16>
    %c0_5 = arith.constant 0 : index
    %c0_6 = arith.constant 0 : index
    %c0_7 = arith.constant 0 : index
    %4 = vector.load %arg3[%c0_5, %c0_6, %c0_7] : memref<3x48x128xbf16, #tpu.memory_space<vmem>>, vector<3x48x128xbf16>
    %5 = vector.shape_cast %4 : vector<3x48x128xbf16> to vector<144x128xbf16>
    %c0_8 = arith.constant 0 : index
    %c0_9 = arith.constant 0 : index
    %c0_10 = arith.constant 0 : index
    %6 = vector.load %arg4[%c0_8, %c0_9, %c0_10] : memref<3x128x256xbf16, #tpu.memory_space<vmem>>, vector<1x128x256xbf16>
    %7 = vector.shape_cast %6 : vector<1x128x256xbf16> to vector<128x256xbf16>
    %cst = arith.constant dense<0.000000e+00> : vector<144x256xf32>
    %8 = tpu.matmul %1, %7, %cst {dimension_numbers = #tpu.dot_dimension_numbers<[1], [0], [0], [1], [0, 0, 1, 1], [], []>} : vector<144x128xbf16>, vector<128x256xbf16>, vector<144x256xf32> -> vector<144x256xf32>
    %c1 = arith.constant 1 : index
    %c0_11 = arith.constant 0 : index
    %c0_12 = arith.constant 0 : index
    %9 = vector.load %arg4[%c1, %c0_11, %c0_12] : memref<3x128x256xbf16, #tpu.memory_space<vmem>>, vector<1x128x256xbf16>
    %10 = vector.shape_cast %9 : vector<1x128x256xbf16> to vector<128x256xbf16>
    %cst_13 = arith.constant dense<0.000000e+00> : vector<144x256xf32>
    %11 = tpu.matmul %3, %10, %cst_13 {dimension_numbers = #tpu.dot_dimension_numbers<[1], [0], [0], [1], [0, 0, 1, 1], [], []>} : vector<144x128xbf16>, vector<128x256xbf16>, vector<144x256xf32> -> vector<144x256xf32>
    %12 = arith.addf %8, %11 : vector<144x256xf32>
    %c2 = arith.constant 2 : index
    %c0_14 = arith.constant 0 : index
    %c0_15 = arith.constant 0 : index
    %13 = vector.load %arg4[%c2, %c0_14, %c0_15] : memref<3x128x256xbf16, #tpu.memory_space<vmem>>, vector<1x128x256xbf16>
    %14 = vector.shape_cast %13 : vector<1x128x256xbf16> to vector<128x256xbf16>
    %cst_16 = arith.constant dense<0.000000e+00> : vector<144x256xf32>
    %15 = tpu.matmul %5, %14, %cst_16 {dimension_numbers = #tpu.dot_dimension_numbers<[1], [0], [0], [1], [0, 0, 1, 1], [], []>} : vector<144x128xbf16>, vector<128x256xbf16>, vector<144x256xf32> -> vector<144x256xf32>
    %16 = arith.addf %12, %15 : vector<144x256xf32>
    %c0_17 = arith.constant 0 : index
    %c0_18 = arith.constant 0 : index
    %17 = vector.load %arg5[%c0_17, %c0_18] : memref<1x256xf32, #tpu.memory_space<vmem>>, vector<1x256xf32>
    %18 = vector.broadcast %17 : vector<1x256xf32> to vector<144x256xf32>
    %19 = arith.addf %16, %18 : vector<144x256xf32>
    %cst_19 = arith.constant 0.000000e+00 : f32
    %20 = vector.broadcast %cst_19 : f32 to vector<144x256xf32>
    %21 = arith.maximumf %19, %20 : vector<144x256xf32>
    %22 = vector.extract_strided_slice %21 {offsets = [0, 0], sizes = [48, 256], strides = [1, 1]} : vector<144x256xf32> to vector<48x256xf32>
    %23 = vector.extract_strided_slice %21 {offsets = [48, 0], sizes = [48, 256], strides = [1, 1]} : vector<144x256xf32> to vector<48x256xf32>
    %24 = vector.extract_strided_slice %21 {offsets = [96, 0], sizes = [48, 256], strides = [1, 1]} : vector<144x256xf32> to vector<48x256xf32>
    %25 = tpu.iota {dimensions = array<i32: 0>} : vector<48x256xi32>
    %c8_i32 = arith.constant 8 : i32
    %c0_i32 = arith.constant 0 : i32
    %26 = arith.cmpi eq, %c8_i32, %c0_i32 : i32
    %c1_i32 = arith.constant 1 : i32
    %27 = arith.select %26, %c1_i32, %c8_i32 : i32
    %28 = vector.broadcast %27 : i32 to vector<48x256xi32>
    %29 = arith.remsi %25, %28 : vector<48x256xi32>
    %c0_i32_20 = arith.constant 0 : i32
    %30 = vector.broadcast %c0_i32_20 : i32 to vector<48x256xi32>
    %31 = arith.cmpi ne, %29, %30 : vector<48x256xi32>
    %c0_i32_21 = arith.constant 0 : i32
    %32 = vector.broadcast %c0_i32_21 : i32 to vector<48x256xi32>
    %33 = arith.cmpi slt, %29, %32 : vector<48x256xi32>
    %c0_i32_22 = arith.constant 0 : i32
    %34 = arith.cmpi slt, %27, %c0_i32_22 : i32
    %35 = vector.broadcast %34 : i1 to vector<48x256xi1>
    %36 = vector.broadcast %35 : vector<48x256xi1> to vector<48x256xi1>
    %37 = arith.xori %33, %36 : vector<48x256xi1>
    %38 = arith.andi %37, %31 : vector<48x256xi1>
    %39 = vector.broadcast %27 : i32 to vector<48x256xi32>
    %40 = arith.addi %29, %39 : vector<48x256xi32>
    %41 = arith.select %38, %40, %29 : vector<48x256xi1>, vector<48x256xi32>
    %c0_i32_23 = arith.constant 0 : i32
    %42 = vector.broadcast %c0_i32_23 : i32 to vector<48x256xi32>
    %43 = arith.cmpi eq, %41, %42 : vector<48x256xi32>
    %cst_24 = arith.constant 0.000000e+00 : f32
    %44 = vector.broadcast %cst_24 : f32 to vector<48x256xf32>
    %45 = arith.select %43, %44, %24 : vector<48x256xi1>, vector<48x256xf32>
    %46 = arith.truncf %22 : vector<48x256xf32> to vector<48x256xbf16>
    %c0_25 = arith.constant 0 : index
    %c0_26 = arith.constant 0 : index
    %c0_27 = arith.constant 0 : index
    %47 = vector.load %arg10[%c0_25, %c0_26, %c0_27] : memref<2x48x256xbf16, #tpu.memory_space<vmem>>, vector<1x48x256xbf16>
    %48 = vector.shape_cast %47 : vector<1x48x256xbf16> to vector<48x256xbf16>
    %49 = vector.shape_cast %46 : vector<48x256xbf16> to vector<1x48x256xbf16>
    tpu.vector_store %arg10[%c0_25, %c0_26, %c0_27], %49 {strides = array<i32>} : memref<2x48x256xbf16, #tpu.memory_space<vmem>>, vector<1x48x256xbf16>,
    %50 = arith.truncf %23 : vector<48x256xf32> to vector<48x256xbf16>
    %c1_28 = arith.constant 1 : index
    %c0_29 = arith.constant 0 : index
    %c0_30 = arith.constant 0 : index
    %51 = vector.load %arg10[%c1_28, %c0_29, %c0_30] : memref<2x48x256xbf16, #tpu.memory_space<vmem>>, vector<1x48x256xbf16>
    %52 = vector.shape_cast %51 : vector<1x48x256xbf16> to vector<48x256xbf16>
    %53 = vector.shape_cast %50 : vector<48x256xbf16> to vector<1x48x256xbf16>
    tpu.vector_store %arg10[%c1_28, %c0_29, %c0_30], %53 {strides = array<i32>} : memref<2x48x256xbf16, #tpu.memory_space<vmem>>, vector<1x48x256xbf16>,
    %54 = arith.truncf %45 : vector<48x256xf32> to vector<48x256xbf16>
    %c0_31 = arith.constant 0 : index
    %c0_32 = arith.constant 0 : index
    %c0_33 = arith.constant 0 : index
    %55 = vector.load %arg6[%c0_31, %c0_32, %c0_33] : memref<3x256x256xbf16, #tpu.memory_space<vmem>>, vector<1x256x256xbf16>
    %56 = vector.shape_cast %55 : vector<1x256x256xbf16> to vector<256x256xbf16>
    %cst_34 = arith.constant dense<0.000000e+00> : vector<48x256xf32>
    %57 = tpu.matmul %54, %56, %cst_34 {dimension_numbers = #tpu.dot_dimension_numbers<[1], [0], [0], [1], [0, 0, 1, 1], [], []>} : vector<48x256xbf16>, vector<256x256xbf16>, vector<48x256xf32> -> vector<48x256xf32>
    %58 = arith.truncf %22 : vector<48x256xf32> to vector<48x256xbf16>
    %c1_35 = arith.constant 1 : index
    %c0_36 = arith.constant 0 : index
    %c0_37 = arith.constant 0 : index
    %59 = vector.load %arg6[%c1_35, %c0_36, %c0_37] : memref<3x256x256xbf16, #tpu.memory_space<vmem>>, vector<1x256x256xbf16>
    %60 = vector.shape_cast %59 : vector<1x256x256xbf16> to vector<256x256xbf16>
    %cst_38 = arith.constant dense<0.000000e+00> : vector<48x256xf32>
    %61 = tpu.matmul %58, %60, %cst_38 {dimension_numbers = #tpu.dot_dimension_numbers<[1], [0], [0], [1], [0, 0, 1, 1], [], []>} : vector<48x256xbf16>, vector<256x256xbf16>, vector<48x256xf32> -> vector<48x256xf32>
    %62 = arith.addf %57, %61 : vector<48x256xf32>
    %63 = arith.truncf %23 : vector<48x256xf32> to vector<48x256xbf16>
    %c2_39 = arith.constant 2 : index
    %c0_40 = arith.constant 0 : index
    %c0_41 = arith.constant 0 : index
    %64 = vector.load %arg6[%c2_39, %c0_40, %c0_41] : memref<3x256x256xbf16, #tpu.memory_space<vmem>>, vector<1x256x256xbf16>
    %65 = vector.shape_cast %64 : vector<1x256x256xbf16> to vector<256x256xbf16>
    %cst_42 = arith.constant dense<0.000000e+00> : vector<48x256xf32>
    %66 = tpu.matmul %63, %65, %cst_42 {dimension_numbers = #tpu.dot_dimension_numbers<[1], [0], [0], [1], [0, 0, 1, 1], [], []>} : vector<48x256xbf16>, vector<256x256xbf16>, vector<48x256xf32> -> vector<48x256xf32>
    %67 = arith.addf %62, %66 : vector<48x256xf32>
    %c0_43 = arith.constant 0 : index
    %c0_44 = arith.constant 0 : index
    %68 = vector.load %arg7[%c0_43, %c0_44] : memref<1x256xf32, #tpu.memory_space<vmem>>, vector<1x256xf32>
    %69 = vector.broadcast %68 : vector<1x256xf32> to vector<48x256xf32>
    %70 = arith.addf %67, %69 : vector<48x256xf32>
    %cst_45 = arith.constant 0.000000e+00 : f32
    %71 = vector.broadcast %cst_45 : f32 to vector<48x256xf32>
    %72 = arith.maximumf %70, %71 : vector<48x256xf32>
    %73 = arith.truncf %72 : vector<48x256xf32> to vector<48x256xbf16>
    %c0_46 = arith.constant 0 : index
    %c0_47 = arith.constant 0 : index
    %74 = vector.load %arg11[%c0_46, %c0_47] : memref<48x256xbf16, #tpu.memory_space<vmem>>, vector<48x256xbf16>
    tpu.vector_store %arg11[%c0_46, %c0_47], %73 {strides = array<i32>} : memref<48x256xbf16, #tpu.memory_space<vmem>>, vector<48x256xbf16>,
    %75 = arith.truncf %72 : vector<48x256xf32> to vector<48x256xbf16>
    %c0_48 = arith.constant 0 : index
    %c0_49 = arith.constant 0 : index
    %76 = vector.load %arg8[%c0_48, %c0_49] : memref<256x128xbf16, #tpu.memory_space<vmem>>, vector<256x128xbf16>
    %cst_50 = arith.constant dense<0.000000e+00> : vector<48x128xf32>
    %77 = tpu.matmul %75, %76, %cst_50 {dimension_numbers = #tpu.dot_dimension_numbers<[1], [0], [0], [1], [0, 0, 1, 1], [], []>} : vector<48x256xbf16>, vector<256x128xbf16>, vector<48x128xf32> -> vector<48x128xf32>
    %c0_51 = arith.constant 0 : index
    %c0_52 = arith.constant 0 : index
    %78 = vector.load %arg9[%c0_51, %c0_52] : memref<1x128xf32, #tpu.memory_space<vmem>>, vector<1x128xf32>
    %79 = vector.broadcast %78 : vector<1x128xf32> to vector<48x128xf32>
    %80 = arith.addf %77, %79 : vector<48x128xf32>
    %cst_53 = arith.constant 0.000000e+00 : f32
    %81 = vector.broadcast %cst_53 : f32 to vector<48x128xf32>
    %82 = arith.maximumf %80, %81 : vector<48x128xf32>
    %c0_54 = arith.constant 0 : index
    %c0_55 = arith.constant 0 : index
    %83 = vector.load %arg12[%c0_54, %c0_55] : memref<48x128xf32, #tpu.memory_space<vmem>>, vector<48x128xf32>
    tpu.vector_store %arg12[%c0_54, %c0_55], %82 {strides = array<i32>} : memref<48x128xf32, #tpu.memory_space<vmem>>, vector<48x128xf32>,
    return
  }
  func.func @transform_0(%arg0: i32) -> (i32, i32, i32) {
    %c0_i32 = arith.constant 0 : i32
    %c0_i32_0 = arith.constant 0 : i32
    %c0_i32_1 = arith.constant 0 : i32
    return %c0_i32, %arg0, %c0_i32_0 : i32, i32, i32
  }
  func.func @transform_1(%arg0: i32) -> (i32, i32, i32) {
    %c0_i32 = arith.constant 0 : i32
    %c0_i32_0 = arith.constant 0 : i32
    %c0_i32_1 = arith.constant 0 : i32
    return %c0_i32, %arg0, %c0_i32_0 : i32, i32, i32
  }
  func.func @transform_2(%arg0: i32) -> (i32, i32, i32) {
    %c0_i32 = arith.constant 0 : i32
    %c0_i32_0 = arith.constant 0 : i32
    %c0_i32_1 = arith.constant 0 : i32
    return %c0_i32, %arg0, %c0_i32_0 : i32, i32, i32
  }
  func.func @transform_3(%arg0: i32) -> (i32, i32, i32) {
    %c0_i32 = arith.constant 0 : i32
    %c0_i32_0 = arith.constant 0 : i32
    %c0_i32_1 = arith.constant 0 : i32
    %c0_i32_2 = arith.constant 0 : i32
    return %c0_i32, %c0_i32_0, %c0_i32_1 : i32, i32, i32
  }
  func.func @transform_4(%arg0: i32) -> (i32, i32) {
    %c0_i32 = arith.constant 0 : i32
    %c0_i32_0 = arith.constant 0 : i32
    %c0_i32_1 = arith.constant 0 : i32
    return %c0_i32, %c0_i32_0 : i32, i32
  }
  func.func @transform_5(%arg0: i32) -> (i32, i32, i32) {
    %c0_i32 = arith.constant 0 : i32
    %c0_i32_0 = arith.constant 0 : i32
    %c0_i32_1 = arith.constant 0 : i32
    %c0_i32_2 = arith.constant 0 : i32
    return %c0_i32, %c0_i32_0, %c0_i32_1 : i32, i32, i32
  }
  func.func @transform_6(%arg0: i32) -> (i32, i32) {
    %c0_i32 = arith.constant 0 : i32
    %c0_i32_0 = arith.constant 0 : i32
    %c0_i32_1 = arith.constant 0 : i32
    return %c0_i32, %c0_i32_0 : i32, i32
  }
  func.func @transform_7(%arg0: i32) -> (i32, i32) {
    %c0_i32 = arith.constant 0 : i32
    %c0_i32_0 = arith.constant 0 : i32
    %c0_i32_1 = arith.constant 0 : i32
    return %c0_i32, %c0_i32_0 : i32, i32
  }
  func.func @transform_8(%arg0: i32) -> (i32, i32) {
    %c0_i32 = arith.constant 0 : i32
    %c0_i32_0 = arith.constant 0 : i32
    %c0_i32_1 = arith.constant 0 : i32
    return %c0_i32, %c0_i32_0 : i32, i32
  }
  func.func @transform_9(%arg0: i32) -> (i32, i32, i32) {
    %c0_i32 = arith.constant 0 : i32
    %c0_i32_0 = arith.constant 0 : i32
    %c0_i32_1 = arith.constant 0 : i32
    return %c0_i32, %arg0, %c0_i32_0 : i32, i32, i32
  }
  func.func @transform_10(%arg0: i32) -> (i32, i32) {
    %c0_i32 = arith.constant 0 : i32
    %c0_i32_0 = arith.constant 0 : i32
    return %arg0, %c0_i32 : i32, i32
  }
  func.func @transform_11(%arg0: i32) -> (i32, i32) {
    %c0_i32 = arith.constant 0 : i32
    %c0_i32_0 = arith.constant 0 : i32
    return %arg0, %c0_i32 : i32, i32
  }
}

</mosaic_0001>

<llo_original>
// kernel: _forward_features.1
$region0: #{_forward_features.1}
  #allocation0 [shape = 'u32[]', space=smem, size = 0x4, offset = 0x4, fixed_abs, tag = 'smem constant byte address 0x4 - core index']
  #allocation1 [shape = 'u32[72,128]{1,0:T(1,128)}', space=vmem, size = 0x9000, scoped, tag = 'internal scratch']
  %s0 = inlined_call_operand.vmem [shape: bf16[3,48,128], index: 0, kind: input, shape index: {}]
  %s1 = inlined_call_operand.vmem [shape: bf16[3,48,128], index: 1, kind: input, shape index: {}]
  %s2 = inlined_call_operand.vmem [shape: bf16[3,48,128], index: 2, kind: input, shape index: {}]
  %s3 = inlined_call_operand.vmem [shape: bf16[3,128,256], index: 3, kind: input, shape index: {}]
  %s4 = inlined_call_operand.vmem [shape: f32[1,256], index: 4, kind: input, shape index: {}]
  %s5 = inlined_call_operand.vmem [shape: bf16[3,256,256], index: 5, kind: input, shape index: {}]
  %s6 = inlined_call_operand.vmem [shape: f32[1,256], index: 6, kind: input, shape index: {}]
  %s7 = inlined_call_operand.vmem [shape: bf16[256,128], index: 7, kind: input, shape index: {}]
  %s8 = inlined_call_operand.vmem [shape: f32[1,128], index: 8, kind: input, shape index: {}]
  %s9 = inlined_call_operand.vmem [shape: bf16[2,48,256], index: 9, kind: output, shape index: {0}]
  %s10 = inlined_call_operand.vmem [shape: bf16[48,256], index: 10, kind: output, shape index: {1}]
  %s11 = inlined_call_operand.vmem [shape: f32[48,128], index: 11, kind: output, shape index: {2}]
  %12 = xla_tuple %s9, %s10, %s11
  %s13 = sld [smem:[#allocation0]]
  $region62: #{_forward_features.1} parent=0
    _
  %s15 = ssub.s32 1, %s13
  %s16 = scalar_select 0, %s15, %s13
  // Predicated region
  $region2: #{_forward_features.1} parent=0 // pred_check
    _
  $region3: #{_forward_features.1} parent=0 // pred_check_branch
    %18 = sbr.rel (0) target = $region5
  $region4: #{_forward_features.1} parent=0 // pred_region
    _
  $region5: #{_forward_features.1} parent=0 // pred_fallthru
    _
  // Predicated region
  $region6: #{_forward_features.1} parent=0 // pred_check
    _
  $region7: #{_forward_features.1} parent=0 // pred_check_branch
    %20 = sbr.rel (0) target = $region9
  $region8: #{_forward_features.1} parent=0 // pred_region
    _
  $region9: #{_forward_features.1} parent=0 // pred_fallthru
    _
  // Predicated region
  $region10: #{_forward_features.1} parent=0 // pred_check
    _
  $region11: #{_forward_features.1} parent=0 // pred_check_branch
    %22 = sbr.rel (0) target = $region13
  $region12: #{_forward_features.1} parent=0 // pred_region
    _
  $region13: #{_forward_features.1} parent=0 // pred_fallthru
    _
  // Predicated region
  $region14: #{_forward_features.1} parent=0 // pred_check
    _
  $region15: #{_forward_features.1} parent=0 // pred_check_branch
    %24 = sbr.rel (0) target = $region17
  $region16: #{_forward_features.1} parent=0 // pred_region
    _
  $region17: #{_forward_features.1} parent=0 // pred_fallthru
    _
  // Predicated region
  $region18: #{_forward_features.1} parent=0 // pred_check
    _
  $region19: #{_forward_features.1} parent=0 // pred_check_branch
    %26 = sbr.rel (0) target = $region21
  $region20: #{_forward_features.1} parent=0 // pred_region
    _
  $region21: #{_forward_features.1} parent=0 // pred_fallthru
    _
  // Predicated region
  $region22: #{_forward_features.1} parent=0 // pred_check
    _
  $region23: #{_forward_features.1} parent=0 // pred_check_branch
    %28 = sbr.rel (0) target = $region25
  $region24: #{_forward_features.1} parent=0 // pred_region
    _
  $region25: #{_forward_features.1} parent=0 // pred_fallthru
    _
  // Predicated region
  $region26: #{_forward_features.1} parent=0 // pred_check
    _
  $region27: #{_forward_features.1} parent=0 // pred_check_branch
    %30 = sbr.rel (0) target = $region29
  $region28: #{_forward_features.1} parent=0 // pred_region
    _
  $region29: #{_forward_features.1} parent=0 // pred_fallthru
    _
  // Predicated region
  $region30: #{_forward_features.1} parent=0 // pred_check
    _
  $region31: #{_forward_features.1} parent=0 // pred_check_branch
    %32 = sbr.rel (0) target = $region33
  $region32: #{_forward_features.1} parent=0 // pred_region
    _
  $region33: #{_forward_features.1} parent=0 // pred_fallthru
    _
  // Predicated region
  $region34: #{_forward_features.1} parent=0 // pred_check
    _
  $region35: #{_forward_features.1} parent=0 // pred_check_branch
    %34 = sbr.rel (0) target = $region37
  $region36: #{_forward_features.1} parent=0 // pred_region
    _
  $region37: #{_forward_features.1} parent=0 // pred_fallthru
    _
  %v35 = vld [vmem:[%s0] sm:$0xf]
  %v36 = vld [vmem:[%s0 + $0x4] sm:$0xf]
  %v37 = vld [vmem:[%s0 + $0x8] sm:$0xf]
  %v38 = vld [vmem:[%s0 + $0xc] sm:$0xf]
  %v39 = vld [vmem:[%s0 + $0x10] sm:$0xf]
  %v40 = vld [vmem:[%s0 + $0x14] sm:$0xf]
  %v41 = vld [vmem:[%s0 + $0x18] sm:$0xf]
  %v42 = vld [vmem:[%s0 + $0x1c] sm:$0xf]
  %v43 = vld [vmem:[%s0 + $0x20] sm:$0xf]
  %v44 = vld [vmem:[%s0 + $0x24] sm:$0xf]
  %v45 = vld [vmem:[%s0 + $0x28] sm:$0xf]
  %v46 = vld [vmem:[%s0 + $0x2c] sm:$0xf]
  %v47 = vld [vmem:[%s0 + $0x30] sm:$0xf]
  %v48 = vld [vmem:[%s0 + $0x34] sm:$0xf]
  %v49 = vld [vmem:[%s0 + $0x38] sm:$0xf]
  %v50 = vld [vmem:[%s0 + $0x3c] sm:$0xf]
  %v51 = vld [vmem:[%s0 + $0x40] sm:$0xf]
  %v52 = vld [vmem:[%s0 + $0x44] sm:$0xf]
  %v53 = vld [vmem:[%s1] sm:$0xf]
  %v54 = vld [vmem:[%s1 + $0x4] sm:$0xf]
  %v55 = vld [vmem:[%s1 + $0x8] sm:$0xf]
  %v56 = vld [vmem:[%s1 + $0xc] sm:$0xf]
  %v57 = vld [vmem:[%s1 + $0x10] sm:$0xf]
  %v58 = vld [vmem:[%s1 + $0x14] sm:$0xf]
  %v59 = vld [vmem:[%s1 + $0x18] sm:$0xf]
  %v60 = vld [vmem:[%s1 + $0x1c] sm:$0xf]
  %v61 = vld [vmem:[%s1 + $0x20] sm:$0xf]
  %v62 = vld [vmem:[%s1 + $0x24] sm:$0xf]
  %v63 = vld [vmem:[%s1 + $0x28] sm:$0xf]
  %v64 = vld [vmem:[%s1 + $0x2c] sm:$0xf]
  %v65 = vld [vmem:[%s1 + $0x30] sm:$0xf]
  %v66 = vld [vmem:[%s1 + $0x34] sm:$0xf]
  %v67 = vld [vmem:[%s1 + $0x38] sm:$0xf]
  %v68 = vld [vmem:[%s1 + $0x3c] sm:$0xf]
  %v69 = vld [vmem:[%s1 + $0x40] sm:$0xf]
  %v70 = vld [vmem:[%s1 + $0x44] sm:$0xf]
  %v71 = vld [vmem:[%s2] sm:$0xf]
  %v72 = vld [vmem:[%s2 + $0x4] sm:$0xf]
  %v73 = vld [vmem:[%s2 + $0x8] sm:$0xf]
  %v74 = vld [vmem:[%s2 + $0xc] sm:$0xf]
  %v75 = vld [vmem:[%s2 + $0x10] sm:$0xf]
  %v76 = vld [vmem:[%s2 + $0x14] sm:$0xf]
  %v77 = vld [vmem:[%s2 + $0x18] sm:$0xf]
  %v78 = vld [vmem:[%s2 + $0x1c] sm:$0xf]
  %v79 = vld [vmem:[%s2 + $0x20] sm:$0xf]
  %v80 = vld [vmem:[%s2 + $0x24] sm:$0xf]
  %v81 = vld [vmem:[%s2 + $0x28] sm:$0xf]
  %v82 = vld [vmem:[%s2 + $0x2c] sm:$0xf]
  %v83 = vld [vmem:[%s2 + $0x30] sm:$0xf]
  %v84 = vld [vmem:[%s2 + $0x34] sm:$0xf]
  %v85 = vld [vmem:[%s2 + $0x38] sm:$0xf]
  %v86 = vld [vmem:[%s2 + $0x3c] sm:$0xf]
  %v87 = vld [vmem:[%s2 + $0x40] sm:$0xf]
  %v88 = vld [vmem:[%s2 + $0x44] sm:$0xf]
  %v89 = vld [vmem:[%s3] sm:$0xff]
  %v90 = vld [vmem:[%s3 + $0x8] sm:$0xff]
  %v91 = vld [vmem:[%s3 + $0x10] sm:$0xff]
  %v92 = vld [vmem:[%s3 + $0x18] sm:$0xff]
  %v93 = vld [vmem:[%s3 + $0x20] sm:$0xff]
  %v94 = vld [vmem:[%s3 + $0x28] sm:$0xff]
  %v95 = vld [vmem:[%s3 + $0x30] sm:$0xff]
  %v96 = vld [vmem:[%s3 + $0x38] sm:$0xff]
  %v97 = vld [vmem:[%s3 + $0x40] sm:$0xff]
  %v98 = vld [vmem:[%s3 + $0x48] sm:$0xff]
  %v99 = vld [vmem:[%s3 + $0x50] sm:$0xff]
  %v100 = vld [vmem:[%s3 + $0x58] sm:$0xff]
  %v101 = vld [vmem:[%s3 + $0x60] sm:$0xff]
  %v102 = vld [vmem:[%s3 + $0x68] sm:$0xff]
  %v103 = vld [vmem:[%s3 + $0x70] sm:$0xff]
  %v104 = vld [vmem:[%s3 + $0x78] sm:$0xff]
  %s105 = scalar_lea.vmem %s3, 128
  %v106 = vld [vmem:[%s105] sm:$0xff]
  %v107 = vld [vmem:[%s105 + $0x8] sm:$0xff]
  %v108 = vld [vmem:[%s105 + $0x10] sm:$0xff]
  %v109 = vld [vmem:[%s105 + $0x18] sm:$0xff]
  %v110 = vld [vmem:[%s105 + $0x20] sm:$0xff]
  %v111 = vld [vmem:[%s105 + $0x28] sm:$0xff]
  %v112 = vld [vmem:[%s105 + $0x30] sm:$0xff]
  %v113 = vld [vmem:[%s105 + $0x38] sm:$0xff]
  %v114 = vld [vmem:[%s105 + $0x40] sm:$0xff]
  %v115 = vld [vmem:[%s105 + $0x48] sm:$0xff]
  %v116 = vld [vmem:[%s105 + $0x50] sm:$0xff]
  %v117 = vld [vmem:[%s105 + $0x58] sm:$0xff]
  %v118 = vld [vmem:[%s105 + $0x60] sm:$0xff]
  %v119 = vld [vmem:[%s105 + $0x68] sm:$0xff]
  %v120 = vld [vmem:[%s105 + $0x70] sm:$0xff]
  %v121 = vld [vmem:[%s105 + $0x78] sm:$0xff]
  %v140 = vunpack.c.l.b16 %v53
  %v141 = vunpack.c.l.b16 %v54
  %v142 = vunpack.c.l.b16 %v55
  %v143 = vunpack.c.l.b16 %v56
  %v144 = vunpack.c.l.b16 %v57
  %v145 = vunpack.c.l.b16 %v58
  %v146 = vunpack.c.l.b16 %v59
  %v147 = vunpack.c.l.b16 %v60
  %v148 = vunpack.c.l.b16 %v61
  %v149 = vunpack.c.l.b16 %v62
  %v150 = vunpack.c.l.b16 %v63
  %v151 = vunpack.c.l.b16 %v64
  %v152 = vunpack.c.l.b16 %v65
  %v153 = vunpack.c.l.b16 %v66
  %v154 = vunpack.c.l.b16 %v67
  %v155 = vunpack.c.l.b16 %v68
  %v156 = vunpack.c.l.b16 %v69
  %v157 = vunpack.c.l.b16 %v70
  %v158 = vpack.c.b16 %v141, %v140
  %v159 = vpack.c.b16 %v143, %v142
  %v160 = vpack.c.b16 %v145, %v144
  %v161 = vpack.c.b16 %v147, %v146
  %v162 = vpack.c.b16 %v149, %v148
  %v163 = vpack.c.b16 %v151, %v150
  %v164 = vpack.c.b16 %v153, %v152
  %v165 = vpack.c.b16 %v155, %v154
  %v166 = vpack.c.b16 %v157, %v156
  %v192 = vunpack.c.l.b16 %v106
  %v193 = vunpack.c.h.b16 %v106
  %v194 = vunpack.c.l.b16 %v107
  %v195 = vunpack.c.h.b16 %v107
  %v196 = vunpack.c.l.b16 %v108
  %v197 = vunpack.c.h.b16 %v108
  %v198 = vunpack.c.l.b16 %v109
  %v199 = vunpack.c.h.b16 %v109
  %v200 = vunpack.c.l.b16 %v110
  %v201 = vunpack.c.h.b16 %v110
  %v202 = vunpack.c.l.b16 %v111
  %v203 = vunpack.c.h.b16 %v111
  %v204 = vunpack.c.l.b16 %v112
  %v205 = vunpack.c.h.b16 %v112
  %v206 = vunpack.c.l.b16 %v113
  %v207 = vunpack.c.h.b16 %v113
  %v208 = vunpack.c.l.b16 %v114
  %v209 = vunpack.c.h.b16 %v114
  %v210 = vunpack.c.l.b16 %v115
  %v211 = vunpack.c.h.b16 %v115
  %v212 = vunpack.c.l.b16 %v116
  %v213 = vunpack.c.h.b16 %v116
  %v214 = vunpack.c.l.b16 %v117
  %v215 = vunpack.c.h.b16 %v117
  %v216 = vunpack.c.l.b16 %v118
  %v217 = vunpack.c.h.b16 %v118
  %v218 = vunpack.c.l.b16 %v119
  %v219 = vunpack.c.h.b16 %v119
  %v220 = vunpack.c.l.b16 %v120
  %v221 = vunpack.c.h.b16 %v120
  %v222 = vunpack.c.l.b16 %v121
  %v223 = vunpack.c.h.b16 %v121
  %v224 = vpack.c.b16 %v194, %v192
  %v225 = vpack.c.b16 %v195, %v193
  %v226 = vpack.c.b16 %v198, %v196
  %v227 = vpack.c.b16 %v199, %v197
  %v228 = vpack.c.b16 %v202, %v200
  %v229 = vpack.c.b16 %v203, %v201
  %v230 = vpack.c.b16 %v206, %v204
  %v231 = vpack.c.b16 %v207, %v205
  %v232 = vpack.c.b16 %v210, %v208
  %v233 = vpack.c.b16 %v211, %v209
  %v234 = vpack.c.b16 %v214, %v212
  %v235 = vpack.c.b16 %v215, %v213
  %v236 = vpack.c.b16 %v218, %v216
  %v237 = vpack.c.b16 %v219, %v217
  %v238 = vpack.c.b16 %v222, %v220
  %v239 = vpack.c.b16 %v223, %v221
  %256 = vmatpush.bf16.msra.mxu0 %v238
  %257 = vmatpush.bf16.msra.mxu0 %v236
  %258 = vmatpush.bf16.msra.mxu0 %v234
  %259 = vmatpush.bf16.msra.mxu0 %v232
  %260 = vmatpush.bf16.msra.mxu0 %v230
  %261 = vmatpush.bf16.msra.mxu0 %v228
  %262 = vmatpush.bf16.msra.mxu0 %v226
  %263 = vmatpush.bf16.msra.mxu0 %v224
  %264 = vmatmul.bf16.gmra.mxu0 %v158
  %v265 = vpop.f32.mrf.mxu0
  %v266 = vadd.f32 0.0, %v265
  %v267 = vpop.f32.mrf.mxu0
  %v268 = vadd.f32 0.0, %v267
  %269 = vmatmul.bf16.gmra.mxu0 %v159
  %v270 = vpop.f32.mrf.mxu0
  %v271 = vadd.f32 0.0, %v270
  %v272 = vpop.f32.mrf.mxu0
  %v273 = vadd.f32 0.0, %v272
  %274 = vmatmul.bf16.gmra.mxu0 %v160
  %v275 = vpop.f32.mrf.mxu0
  %v276 = vadd.f32 0.0, %v275
  %v277 = vpop.f32.mrf.mxu0
  %v278 = vadd.f32 0.0, %v277
  %279 = vmatmul.bf16.gmra.mxu0 %v161
  %v280 = vpop.f32.mrf.mxu0
  %v281 = vadd.f32 0.0, %v280
  %v282 = vpop.f32.mrf.mxu0
  %v283 = vadd.f32 0.0, %v282
  %284 = vmatmul.bf16.gmra.mxu0 %v162
  %v285 = vpop.f32.mrf.mxu0
  %v286 = vadd.f32 0.0, %v285
  %v287 = vpop.f32.mrf.mxu0
  %v288 = vadd.f32 0.0, %v287
  %289 = vmatmul.bf16.gmra.mxu0 %v163
  %v290 = vpop.f32.mrf.mxu0
  %v291 = vadd.f32 0.0, %v290
  %v292 = vpop.f32.mrf.mxu0
  %v293 = vadd.f32 0.0, %v292
  %294 = vmatmul.bf16.gmra.mxu0 %v164
  %v295 = vpop.f32.mrf.mxu0
  %v296 = vadd.f32 0.0, %v295
  %v297 = vpop.f32.mrf.mxu0
  %v298 = vadd.f32 0.0, %v297
  %299 = vmatmul.bf16.gmra.mxu0 %v165
  %v300 = vpop.f32.mrf.mxu0
  %v301 = vadd.f32 0.0, %v300
  %v302 = vpop.f32.mrf.mxu0
  %v303 = vadd.f32 0.0, %v302
  %304 = vmatmul.bf16.gmra.mxu0 %v166
  %v305 = vpop.f32.mrf.mxu0
  %v306 = vadd.f32 0.0, %v305
  %v307 = vpop.f32.mrf.mxu0
  %v308 = vadd.f32 0.0, %v307
  %309 = vdwg.mxu0
  %310 = vmatpush.bf16.msra.mxu0 %v239
  %311 = vmatpush.bf16.msra.mxu0 %v237
  %312 = vmatpush.bf16.msra.mxu0 %v235
  %313 = vmatpush.bf16.msra.mxu0 %v233
  %314 = vmatpush.bf16.msra.mxu0 %v231
  %315 = vmatpush.bf16.msra.mxu0 %v229
  %316 = vmatpush.bf16.msra.mxu0 %v227
  %317 = vmatpush.bf16.msra.mxu0 %v225
  %318 = vmatmul.bf16.gmra.mxu0 %v158
  %v319 = vpop.f32.mrf.mxu0
  %v320 = vadd.f32 0.0, %v319
  %v321 = vpop.f32.mrf.mxu0
  %v322 = vadd.f32 0.0, %v321
  %323 = vmatmul.bf16.gmra.mxu0 %v159
  %v324 = vpop.f32.mrf.mxu0
  %v325 = vadd.f32 0.0, %v324
  %v326 = vpop.f32.mrf.mxu0
  %v327 = vadd.f32 0.0, %v326
  %328 = vmatmul.bf16.gmra.mxu0 %v160
  %v329 = vpop.f32.mrf.mxu0
  %v330 = vadd.f32 0.0, %v329
  %v331 = vpop.f32.mrf.mxu0
  %v332 = vadd.f32 0.0, %v331
  %333 = vmatmul.bf16.gmra.mxu0 %v161
  %v334 = vpop.f32.mrf.mxu0
  %v335 = vadd.f32 0.0, %v334
  %v336 = vpop.f32.mrf.mxu0
  %v337 = vadd.f32 0.0, %v336
  %338 = vmatmul.bf16.gmra.mxu0 %v162
  %v339 = vpop.f32.mrf.mxu0
  %v340 = vadd.f32 0.0, %v339
  %v341 = vpop.f32.mrf.mxu0
  %v342 = vadd.f32 0.0, %v341
  %343 = vmatmul.bf16.gmra.mxu0 %v163
  %v344 = vpop.f32.mrf.mxu0
  %v345 = vadd.f32 0.0, %v344
  %v346 = vpop.f32.mrf.mxu0
  %v347 = vadd.f32 0.0, %v346
  %348 = vmatmul.bf16.gmra.mxu0 %v164
  %v349 = vpop.f32.mrf.mxu0
  %v350 = vadd.f32 0.0, %v349
  %v351 = vpop.f32.mrf.mxu0
  %v352 = vadd.f32 0.0, %v351
  %353 = vmatmul.bf16.gmra.mxu0 %v165
  %v354 = vpop.f32.mrf.mxu0
  %v355 = vadd.f32 0.0, %v354
  %v356 = vpop.f32.mrf.mxu0
  %v357 = vadd.f32 0.0, %v356
  %358 = vmatmul.bf16.gmra.mxu0 %v166
  %v359 = vpop.f32.mrf.mxu0
  %v360 = vadd.f32 0.0, %v359
  %v361 = vpop.f32.mrf.mxu0
  %v362 = vadd.f32 0.0, %v361
  %363 = vdwg.mxu0
  %v382 = vunpack.c.l.b16 %v35
  %v383 = vunpack.c.l.b16 %v36
  %v384 = vunpack.c.l.b16 %v37
  %v385 = vunpack.c.l.b16 %v38
  %v386 = vunpack.c.l.b16 %v39
  %v387 = vunpack.c.l.b16 %v40
  %v388 = vunpack.c.l.b16 %v41
  %v389 = vunpack.c.l.b16 %v42
  %v390 = vunpack.c.l.b16 %v43
  %v391 = vunpack.c.l.b16 %v44
  %v392 = vunpack.c.l.b16 %v45
  %v393 = vunpack.c.l.b16 %v46
  %v394 = vunpack.c.l.b16 %v47
  %v395 = vunpack.c.l.b16 %v48
  %v396 = vunpack.c.l.b16 %v49
  %v397 = vunpack.c.l.b16 %v50
  %v398 = vunpack.c.l.b16 %v51
  %v399 = vunpack.c.l.b16 %v52
  %v400 = vpack.c.b16 %v383, %v382
  %v401 = vpack.c.b16 %v385, %v384
  %v402 = vpack.c.b16 %v387, %v386
  %v403 = vpack.c.b16 %v389, %v388
  %v404 = vpack.c.b16 %v391, %v390
  %v405 = vpack.c.b16 %v393, %v392
  %v406 = vpack.c.b16 %v395, %v394
  %v407 = vpack.c.b16 %v397, %v396
  %v408 = vpack.c.b16 %v399, %v398
  %v434 = vunpack.c.l.b16 %v89
  %v435 = vunpack.c.h.b16 %v89
  %v436 = vunpack.c.l.b16 %v90
  %v437 = vunpack.c.h.b16 %v90
  %v438 = vunpack.c.l.b16 %v91
  %v439 = vunpack.c.h.b16 %v91
  %v440 = vunpack.c.l.b16 %v92
  %v441 = vunpack.c.h.b16 %v92
  %v442 = vunpack.c.l.b16 %v93
  %v443 = vunpack.c.h.b16 %v93
  %v444 = vunpack.c.l.b16 %v94
  %v445 = vunpack.c.h.b16 %v94
  %v446 = vunpack.c.l.b16 %v95
  %v447 = vunpack.c.h.b16 %v95
  %v448 = vunpack.c.l.b16 %v96
  %v449 = vunpack.c.h.b16 %v96
  %v450 = vunpack.c.l.b16 %v97
  %v451 = vunpack.c.h.b16 %v97
  %v452 = vunpack.c.l.b16 %v98
  %v453 = vunpack.c.h.b16 %v98
  %v454 = vunpack.c.l.b16 %v99
  %v455 = vunpack.c.h.b16 %v99
  %v456 = vunpack.c.l.b16 %v100
  %v457 = vunpack.c.h.b16 %v100
  %v458 = vunpack.c.l.b16 %v101
  %v459 = vunpack.c.h.b16 %v101
  %v460 = vunpack.c.l.b16 %v102
  %v461 = vunpack.c.h.b16 %v102
  %v462 = vunpack.c.l.b16 %v103
  %v463 = vunpack.c.h.b16 %v103
  %v464 = vunpack.c.l.b16 %v104
  %v465 = vunpack.c.h.b16 %v104
  %v466 = vpack.c.b16 %v436, %v434
  %v467 = vpack.c.b16 %v437, %v435
  %v468 = vpack.c.b16 %v440, %v438
  %v469 = vpack.c.b16 %v441, %v439
  %v470 = vpack.c.b16 %v444, %v442
  %v471 = vpack.c.b16 %v445, %v443
  %v472 = vpack.c.b16 %v448, %v446
  %v473 = vpack.c.b16 %v449, %v447
  %v474 = vpack.c.b16 %v452, %v450
  %v475 = vpack.c.b16 %v453, %v451
  %v476 = vpack.c.b16 %v456, %v454
  %v477 = vpack.c.b16 %v457, %v455
  %v478 = vpack.c.b16 %v460, %v458
  %v479 = vpack.c.b16 %v461, %v459
  %v480 = vpack.c.b16 %v464, %v462
  %v481 = vpack.c.b16 %v465, %v463
  %498 = vmatpush.bf16.msra.mxu0 %v480
  %499 = vmatpush.bf16.msra.mxu0 %v478
  %500 = vmatpush.bf16.msra.mxu0 %v476
  %501 = vmatpush.bf16.msra.mxu0 %v474
  %502 = vmatpush.bf16.msra.mxu0 %v472
  %503 = vmatpush.bf16.msra.mxu0 %v470
  %504 = vmatpush.bf16.msra.mxu0 %v468
  %505 = vmatpush.bf16.msra.mxu0 %v466
  %506 = vmatmul.bf16.gmra.mxu0 %v400
  %v507 = vpop.f32.mrf.mxu0
  %v508 = vadd.f32 %v266, %v507
  %v509 = vpop.f32.mrf.mxu0
  %v510 = vadd.f32 %v268, %v509
  %511 = vmatmul.bf16.gmra.mxu0 %v401
  %v512 = vpop.f32.mrf.mxu0
  %v513 = vadd.f32 %v271, %v512
  %v514 = vpop.f32.mrf.mxu0
  %v515 = vadd.f32 %v273, %v514
  %516 = vmatmul.bf16.gmra.mxu0 %v402
  %v517 = vpop.f32.mrf.mxu0
  %v518 = vadd.f32 %v276, %v517
  %v519 = vpop.f32.mrf.mxu0
  %v520 = vadd.f32 %v278, %v519
  %521 = vmatmul.bf16.gmra.mxu0 %v403
  %v522 = vpop.f32.mrf.mxu0
  %v523 = vadd.f32 %v281, %v522
  %v524 = vpop.f32.mrf.mxu0
  %v525 = vadd.f32 %v283, %v524
  %526 = vmatmul.bf16.gmra.mxu0 %v404
  %v527 = vpop.f32.mrf.mxu0
  %v528 = vadd.f32 %v286, %v527
  %v529 = vpop.f32.mrf.mxu0
  %v530 = vadd.f32 %v288, %v529
  %531 = vmatmul.bf16.gmra.mxu0 %v405
  %v532 = vpop.f32.mrf.mxu0
  %v533 = vadd.f32 %v291, %v532
  %v534 = vpop.f32.mrf.mxu0
  %v535 = vadd.f32 %v293, %v534
  %536 = vmatmul.bf16.gmra.mxu0 %v406
  %v537 = vpop.f32.mrf.mxu0
  %v538 = vadd.f32 %v296, %v537
  %v539 = vpop.f32.mrf.mxu0
  %v540 = vadd.f32 %v298, %v539
  %541 = vmatmul.bf16.gmra.mxu0 %v407
  %v542 = vpop.f32.mrf.mxu0
  %v543 = vadd.f32 %v301, %v542
  %v544 = vpop.f32.mrf.mxu0
  %v545 = vadd.f32 %v303, %v544
  %546 = vmatmul.bf16.gmra.mxu0 %v408
  %v547 = vpop.f32.mrf.mxu0
  %v548 = vadd.f32 %v306, %v547
  %v549 = vpop.f32.mrf.mxu0
  %v550 = vadd.f32 %v308, %v549
  %551 = vdwg.mxu0
  %552 = vmatpush.bf16.msra.mxu0 %v481
  %553 = vmatpush.bf16.msra.mxu0 %v479
  %554 = vmatpush.bf16.msra.mxu0 %v477
  %555 = vmatpush.bf16.msra.mxu0 %v475
  %556 = vmatpush.bf16.msra.mxu0 %v473
  %557 = vmatpush.bf16.msra.mxu0 %v471
  %558 = vmatpush.bf16.msra.mxu0 %v469
  %559 = vmatpush.bf16.msra.mxu0 %v467
  %560 = vmatmul.bf16.gmra.mxu0 %v400
  %v561 = vpop.f32.mrf.mxu0
  %v562 = vadd.f32 %v320, %v561
  %v563 = vpop.f32.mrf.mxu0
  %v564 = vadd.f32 %v322, %v563
  %565 = vmatmul.bf16.gmra.mxu0 %v401
  %v566 = vpop.f32.mrf.mxu0
  %v567 = vadd.f32 %v325, %v566
  %v568 = vpop.f32.mrf.mxu0
  %v569 = vadd.f32 %v327, %v568
  %570 = vmatmul.bf16.gmra.mxu0 %v402
  %v571 = vpop.f32.mrf.mxu0
  %v572 = vadd.f32 %v330, %v571
  %v573 = vpop.f32.mrf.mxu0
  %v574 = vadd.f32 %v332, %v573
  %575 = vmatmul.bf16.gmra.mxu0 %v403
  %v576 = vpop.f32.mrf.mxu0
  %v577 = vadd.f32 %v335, %v576
  %v578 = vpop.f32.mrf.mxu0
  %v579 = vadd.f32 %v337, %v578
  %580 = vmatmul.bf16.gmra.mxu0 %v404
  %v581 = vpop.f32.mrf.mxu0
  %v582 = vadd.f32 %v340, %v581
  %v583 = vpop.f32.mrf.mxu0
  %v584 = vadd.f32 %v342, %v583
  %585 = vmatmul.bf16.gmra.mxu0 %v405
  %v586 = vpop.f32.mrf.mxu0
  %v587 = vadd.f32 %v345, %v586
  %v588 = vpop.f32.mrf.mxu0
  %v589 = vadd.f32 %v347, %v588
  %590 = vmatmul.bf16.gmra.mxu0 %v406
  %v591 = vpop.f32.mrf.mxu0
  %v592 = vadd.f32 %v350, %v591
  %v593 = vpop.f32.mrf.mxu0
  %v594 = vadd.f32 %v352, %v593
  %595 = vmatmul.bf16.gmra.mxu0 %v407
  %v596 = vpop.f32.mrf.mxu0
  %v597 = vadd.f32 %v355, %v596
  %v598 = vpop.f32.mrf.mxu0
  %v599 = vadd.f32 %v357, %v598
  %600 = vmatmul.bf16.gmra.mxu0 %v408
  %v601 = vpop.f32.mrf.mxu0
  %v602 = vadd.f32 %v360, %v601
  %v603 = vpop.f32.mrf.mxu0
  %v604 = vadd.f32 %v362, %v603
  %605 = vdwg.mxu0
  %s606 = scalar_lea.vmem %s3, 256
  %v607 = vld [vmem:[%s606] sm:$0xff]
  %v608 = vld [vmem:[%s606 + $0x8] sm:$0xff]
  %v609 = vld [vmem:[%s606 + $0x10] sm:$0xff]
  %v610 = vld [vmem:[%s606 + $0x18] sm:$0xff]
  %v611 = vld [vmem:[%s606 + $0x20] sm:$0xff]
  %v612 = vld [vmem:[%s606 + $0x28] sm:$0xff]
  %v613 = vld [vmem:[%s606 + $0x30] sm:$0xff]
  %v614 = vld [vmem:[%s606 + $0x38] sm:$0xff]
  %v615 = vld [vmem:[%s606 + $0x40] sm:$0xff]
  %v616 = vld [vmem:[%s606 + $0x48] sm:$0xff]
  %v617 = vld [vmem:[%s606 + $0x50] sm:$0xff]
  %v618 = vld [vmem:[%s606 + $0x58] sm:$0xff]
  %v619 = vld [vmem:[%s606 + $0x60] sm:$0xff]
  %v620 = vld [vmem:[%s606 + $0x68] sm:$0xff]
  %v621 = vld [vmem:[%s606 + $0x70] sm:$0xff]
  %v622 = vld [vmem:[%s606 + $0x78] sm:$0xff]
  %v641 = vunpack.c.l.b16 %v71
  %v642 = vunpack.c.l.b16 %v72
  %v643 = vunpack.c.l.b16 %v73
  %v644 = vunpack.c.l.b16 %v74
  %v645 = vunpack.c.l.b16 %v75
  %v646 = vunpack.c.l.b16 %v76
  %v647 = vunpack.c.l.b16 %v77
  %v648 = vunpack.c.l.b16 %v78
  %v649 = vunpack.c.l.b16 %v79
  %v650 = vunpack.c.l.b16 %v80
  %v651 = vunpack.c.l.b16 %v81
  %v652 = vunpack.c.l.b16 %v82
  %v653 = vunpack.c.l.b16 %v83
  %v654 = vunpack.c.l.b16 %v84
  %v655 = vunpack.c.l.b16 %v85
  %v656 = vunpack.c.l.b16 %v86
  %v657 = vunpack.c.l.b16 %v87
  %v658 = vunpack.c.l.b16 %v88
  %v659 = vpack.c.b16 %v642, %v641
  %v660 = vpack.c.b16 %v644, %v643
  %v661 = vpack.c.b16 %v646, %v645
  %v662 = vpack.c.b16 %v648, %v647
  %v663 = vpack.c.b16 %v650, %v649
  %v664 = vpack.c.b16 %v652, %v651
  %v665 = vpack.c.b16 %v654, %v653
  %v666 = vpack.c.b16 %v656, %v655
  %v667 = vpack.c.b16 %v658, %v657
  %v693 = vunpack.c.l.b16 %v607
  %v694 = vunpack.c.h.b16 %v607
  %v695 = vunpack.c.l.b16 %v608
  %v696 = vunpack.c.h.b16 %v608
  %v697 = vunpack.c.l.b16 %v609
  %v698 = vunpack.c.h.b16 %v609
  %v699 = vunpack.c.l.b16 %v610
  %v700 = vunpack.c.h.b16 %v610
  %v701 = vunpack.c.l.b16 %v611
  %v702 = vunpack.c.h.b16 %v611
  %v703 = vunpack.c.l.b16 %v612
  %v704 = vunpack.c.h.b16 %v612
  %v705 = vunpack.c.l.b16 %v613
  %v706 = vunpack.c.h.b16 %v613
  %v707 = vunpack.c.l.b16 %v614
  %v708 = vunpack.c.h.b16 %v614
  %v709 = vunpack.c.l.b16 %v615
  %v710 = vunpack.c.h.b16 %v615
  %v711 = vunpack.c.l.b16 %v616
  %v712 = vunpack.c.h.b16 %v616
  %v713 = vunpack.c.l.b16 %v617
  %v714 = vunpack.c.h.b16 %v617
  %v715 = vunpack.c.l.b16 %v618
  %v716 = vunpack.c.h.b16 %v618
  %v717 = vunpack.c.l.b16 %v619
  %v718 = vunpack.c.h.b16 %v619
  %v719 = vunpack.c.l.b16 %v620
  %v720 = vunpack.c.h.b16 %v620
  %v721 = vunpack.c.l.b16 %v621
  %v722 = vunpack.c.h.b16 %v621
  %v723 = vunpack.c.l.b16 %v622
  %v724 = vunpack.c.h.b16 %v622
  %v725 = vpack.c.b16 %v695, %v693
  %v726 = vpack.c.b16 %v696, %v694
  %v727 = vpack.c.b16 %v699, %v697
  %v728 = vpack.c.b16 %v700, %v698
  %v729 = vpack.c.b16 %v703, %v701
  %v730 = vpack.c.b16 %v704, %v702
  %v731 = vpack.c.b16 %v707, %v705
  %v732 = vpack.c.b16 %v708, %v706
  %v733 = vpack.c.b16 %v711, %v709
  %v734 = vpack.c.b16 %v712, %v710
  %v735 = vpack.c.b16 %v715, %v713
  %v736 = vpack.c.b16 %v716, %v714
  %v737 = vpack.c.b16 %v719, %v717
  %v738 = vpack.c.b16 %v720, %v718
  %v739 = vpack.c.b16 %v723, %v721
  %v740 = vpack.c.b16 %v724, %v722
  %757 = vmatpush.bf16.msra.mxu0 %v739
  %758 = vmatpush.bf16.msra.mxu0 %v737
  %759 = vmatpush.bf16.msra.mxu0 %v735
  %760 = vmatpush.bf16.msra.mxu0 %v733
  %761 = vmatpush.bf16.msra.mxu0 %v731
  %762 = vmatpush.bf16.msra.mxu0 %v729
  %763 = vmatpush.bf16.msra.mxu0 %v727
  %764 = vmatpush.bf16.msra.mxu0 %v725
  %765 = vmatmul.bf16.gmra.mxu0 %v659
  %v766 = vpop.f32.mrf.mxu0
  %v767 = vadd.f32 0.0, %v766
  %v768 = vpop.f32.mrf.mxu0
  %v769 = vadd.f32 0.0, %v768
  %770 = vmatmul.bf16.gmra.mxu0 %v660
  %v771 = vpop.f32.mrf.mxu0
  %v772 = vadd.f32 0.0, %v771
  %v773 = vpop.f32.mrf.mxu0
  %v774 = vadd.f32 0.0, %v773
  %775 = vmatmul.bf16.gmra.mxu0 %v661
  %v776 = vpop.f32.mrf.mxu0
  %v777 = vadd.f32 0.0, %v776
  %v778 = vpop.f32.mrf.mxu0
  %v779 = vadd.f32 0.0, %v778
  %780 = vmatmul.bf16.gmra.mxu0 %v662
  %v781 = vpop.f32.mrf.mxu0
  %v782 = vadd.f32 0.0, %v781
  %v783 = vpop.f32.mrf.mxu0
  %v784 = vadd.f32 0.0, %v783
  %785 = vmatmul.bf16.gmra.mxu0 %v663
  %v786 = vpop.f32.mrf.mxu0
  %v787 = vadd.f32 0.0, %v786
  %v788 = vpop.f32.mrf.mxu0
  %v789 = vadd.f32 0.0, %v788
  %790 = vmatmul.bf16.gmra.mxu0 %v664
  %v791 = vpop.f32.mrf.mxu0
  %v792 = vadd.f32 0.0, %v791
  %v793 = vpop.f32.mrf.mxu0
  %v794 = vadd.f32 0.0, %v793
  %795 = vmatmul.bf16.gmra.mxu0 %v665
  %v796 = vpop.f32.mrf.mxu0
  %v797 = vadd.f32 0.0, %v796
  %v798 = vpop.f32.mrf.mxu0
  %v799 = vadd.f32 0.0, %v798
  %800 = vmatmul.bf16.gmra.mxu0 %v666
  %v801 = vpop.f32.mrf.mxu0
  %v802 = vadd.f32 0.0, %v801
  %v803 = vpop.f32.mrf.mxu0
  %v804 = vadd.f32 0.0, %v803
  %805 = vmatmul.bf16.gmra.mxu0 %v667
  %v806 = vpop.f32.mrf.mxu0
  %v807 = vadd.f32 0.0, %v806
  %v808 = vpop.f32.mrf.mxu0
  %v809 = vadd.f32 0.0, %v808
  %810 = vdwg.mxu0
  %811 = vmatpush.bf16.msra.mxu0 %v740
  %812 = vmatpush.bf16.msra.mxu0 %v738
  %813 = vmatpush.bf16.msra.mxu0 %v736
  %814 = vmatpush.bf16.msra.mxu0 %v734
  %815 = vmatpush.bf16.msra.mxu0 %v732
  %816 = vmatpush.bf16.msra.mxu0 %v730
  %817 = vmatpush.bf16.msra.mxu0 %v728
  %818 = vmatpush.bf16.msra.mxu0 %v726
  %819 = vmatmul.bf16.gmra.mxu0 %v659
  %v820 = vpop.f32.mrf.mxu0
  %v821 = vadd.f32 0.0, %v820
  %v822 = vpop.f32.mrf.mxu0
  %v823 = vadd.f32 0.0, %v822
  %824 = vmatmul.bf16.gmra.mxu0 %v660
  %v825 = vpop.f32.mrf.mxu0
  %v826 = vadd.f32 0.0, %v825
  %v827 = vpop.f32.mrf.mxu0
  %v828 = vadd.f32 0.0, %v827
  %829 = vmatmul.bf16.gmra.mxu0 %v661
  %v830 = vpop.f32.mrf.mxu0
  %v831 = vadd.f32 0.0, %v830
  %v832 = vpop.f32.mrf.mxu0
  %v833 = vadd.f32 0.0, %v832
  %834 = vmatmul.bf16.gmra.mxu0 %v662
  %v835 = vpop.f32.mrf.mxu0
  %v836 = vadd.f32 0.0, %v835
  %v837 = vpop.f32.mrf.mxu0
  %v838 = vadd.f32 0.0, %v837
  %839 = vmatmul.bf16.gmra.mxu0 %v663
  %v840 = vpop.f32.mrf.mxu0
  %v841 = vadd.f32 0.0, %v840
  %v842 = vpop.f32.mrf.mxu0
  %v843 = vadd.f32 0.0, %v842
  %844 = vmatmul.bf16.gmra.mxu0 %v664
  %v845 = vpop.f32.mrf.mxu0
  %v846 = vadd.f32 0.0, %v845
  %v847 = vpop.f32.mrf.mxu0
  %v848 = vadd.f32 0.0, %v847
  %849 = vmatmul.bf16.gmra.mxu0 %v665
  %v850 = vpop.f32.mrf.mxu0
  %v851 = vadd.f32 0.0, %v850
  %v852 = vpop.f32.mrf.mxu0
  %v853 = vadd.f32 0.0, %v852
  %854 = vmatmul.bf16.gmra.mxu0 %v666
  %v855 = vpop.f32.mrf.mxu0
  %v856 = vadd.f32 0.0, %v855
  %v857 = vpop.f32.mrf.mxu0
  %v858 = vadd.f32 0.0, %v857
  %859 = vmatmul.bf16.gmra.mxu0 %v667
  %v860 = vpop.f32.mrf.mxu0
  %v861 = vadd.f32 0.0, %v860
  %v862 = vpop.f32.mrf.mxu0
  %v863 = vadd.f32 0.0, %v862
  %864 = vdwg.mxu0
  %v865 = vadd.f32 %v508, %v767
  %v866 = vadd.f32 %v562, %v821
  %v867 = vadd.f32 %v510, %v769
  %v868 = vadd.f32 %v564, %v823
  %v869 = vadd.f32 %v513, %v772
  %v870 = vadd.f32 %v567, %v826
  %v871 = vadd.f32 %v515, %v774
  %v872 = vadd.f32 %v569, %v828
  %v873 = vadd.f32 %v518, %v777
  %v874 = vadd.f32 %v572, %v831
  %v875 = vadd.f32 %v520, %v779
  %v876 = vadd.f32 %v574, %v833
  %v877 = vadd.f32 %v523, %v782
  %v878 = vadd.f32 %v577, %v836
  %v879 = vadd.f32 %v525, %v784
  %v880 = vadd.f32 %v579, %v838
  %v881 = vadd.f32 %v528, %v787
  %v882 = vadd.f32 %v582, %v841
  %v883 = vadd.f32 %v530, %v789
  %v884 = vadd.f32 %v584, %v843
  %v885 = vadd.f32 %v533, %v792
  %v886 = vadd.f32 %v587, %v846
  %v887 = vadd.f32 %v535, %v794
  %v888 = vadd.f32 %v589, %v848
  %v889 = vadd.f32 %v538, %v797
  %v890 = vadd.f32 %v592, %v851
  %v891 = vadd.f32 %v540, %v799
  %v892 = vadd.f32 %v594, %v853
  %v893 = vadd.f32 %v543, %v802
  %v894 = vadd.f32 %v597, %v856
  %v895 = vadd.f32 %v545, %v804
  %v896 = vadd.f32 %v599, %v858
  %v897 = vadd.f32 %v548, %v807
  %v898 = vadd.f32 %v602, %v861
  %v899 = vadd.f32 %v550, %v809
  %v900 = vadd.f32 %v604, %v863
  %v901 = vld [vmem:[%s4] sm:$0x3]
  %v903 = vperm.slane %v901, 0
  %v904 = vperm.slane %v901, 1
  %v907 = vadd.f32 %v865, %v903
  %v908 = vadd.f32 %v866, %v904
  %v909 = vadd.f32 %v867, %v903
  %v910 = vadd.f32 %v868, %v904
  %v911 = vadd.f32 %v869, %v903
  %v912 = vadd.f32 %v870, %v904
  %v913 = vadd.f32 %v871, %v903
  %v914 = vadd.f32 %v872, %v904
  %v915 = vadd.f32 %v873, %v903
  %v916 = vadd.f32 %v874, %v904
  %v917 = vadd.f32 %v875, %v903
  %v918 = vadd.f32 %v876, %v904
  %v919 = vadd.f32 %v877, %v903
  %v920 = vadd.f32 %v878, %v904
  %v921 = vadd.f32 %v879, %v903
  %v922 = vadd.f32 %v880, %v904
  %v923 = vadd.f32 %v881, %v903
  %v924 = vadd.f32 %v882, %v904
  %v925 = vadd.f32 %v883, %v903
  %v926 = vadd.f32 %v884, %v904
  %v927 = vadd.f32 %v885, %v903
  %v928 = vadd.f32 %v886, %v904
  %v929 = vadd.f32 %v887, %v903
  %v930 = vadd.f32 %v888, %v904
  %v931 = vadd.f32 %v889, %v903
  %v932 = vadd.f32 %v890, %v904
  %v933 = vadd.f32 %v891, %v903
  %v934 = vadd.f32 %v892, %v904
  %v935 = vadd.f32 %v893, %v903
  %v936 = vadd.f32 %v894, %v904
  %v937 = vadd.f32 %v895, %v903
  %v938 = vadd.f32 %v896, %v904
  %v939 = vadd.f32 %v897, %v903
  %v940 = vadd.f32 %v898, %v904
  %v941 = vadd.f32 %v899, %v903
  %v942 = vadd.f32 %v900, %v904
  %v943 = vmax.f32 %v907, 0.0
  %v944 = vmax.f32 %v908, 0.0
  %v945 = vmax.f32 %v909, 0.0
  %v946 = vmax.f32 %v910, 0.0
  %v947 = vmax.f32 %v911, 0.0
  %v948 = vmax.f32 %v912, 0.0
  %v949 = vmax.f32 %v913, 0.0
  %v950 = vmax.f32 %v914, 0.0
  %v951 = vmax.f32 %v915, 0.0
  %v952 = vmax.f32 %v916, 0.0
  %v953 = vmax.f32 %v917, 0.0
  %v954 = vmax.f32 %v918, 0.0
  %v955 = vmax.f32 %v919, 0.0
  %v956 = vmax.f32 %v920, 0.0
  %v957 = vmax.f32 %v921, 0.0
  %v958 = vmax.f32 %v922, 0.0
  %v959 = vmax.f32 %v923, 0.0
  %v960 = vmax.f32 %v924, 0.0
  %v961 = vmax.f32 %v925, 0.0
  %v962 = vmax.f32 %v926, 0.0
  %v963 = vmax.f32 %v927, 0.0
  %v964 = vmax.f32 %v928, 0.0
  %v965 = vmax.f32 %v929, 0.0
  %v966 = vmax.f32 %v930, 0.0
  %v967 = vmax.f32 %v931, 0.0
  %v968 = vmax.f32 %v932, 0.0
  %v969 = vmax.f32 %v933, 0.0
  %v970 = vmax.f32 %v934, 0.0
  %v971 = vmax.f32 %v935, 0.0
  %v972 = vmax.f32 %v936, 0.0
  %v973 = vmax.f32 %v937, 0.0
  %v974 = vmax.f32 %v938, 0.0
  %v975 = vmax.f32 %v939, 0.0
  %v976 = vmax.f32 %v940, 0.0
  %v977 = vmax.f32 %v941, 0.0
  %v978 = vmax.f32 %v942, 0.0
  %v979 = vlaneseq
  %v980 = vshrl.u32 %v979, 7
  %v981 = vadd.s32 %v980, 8
  %v982 = vadd.s32 %v980, 16
  %v983 = vadd.s32 %v980, 24
  %v984 = vadd.s32 %v980, 32
  %v985 = vadd.s32 %v980, 40
  %vm986 = vcmp.lt.s32.totalorder %v980, 0
  %v987 = vsub.s32 0, %v980
  %v988 = vsel %vm986, %v987, %v980
  %v989 = vshrl.u32 %v988, 3
  %v990 = vand.u32 %v988, 7
  %v991 = vsub.s32 0, %v990
  %v992 = vsel %vm986, %v991, %v990
  %vm993 = vcmp.lt.s32.totalorder %v981, 0
  %v994 = vsub.s32 0, %v981
  %v995 = vsel %vm993, %v994, %v981
  %v996 = vshrl.u32 %v995, 3
  %v997 = vand.u32 %v995, 7
  %v998 = vsub.s32 0, %v997
  %v999 = vsel %vm993, %v998, %v997
  %vm1000 = vcmp.lt.s32.totalorder %v982, 0
  %v1001 = vsub.s32 0, %v982
  %v1002 = vsel %vm1000, %v1001, %v982
  %v1003 = vshrl.u32 %v1002, 3
  %v1004 = vand.u32 %v1002, 7
  %v1005 = vsub.s32 0, %v1004
  %v1006 = vsel %vm1000, %v1005, %v1004
  %vm1007 = vcmp.lt.s32.totalorder %v983, 0
  %v1008 = vsub.s32 0, %v983
  %v1009 = vsel %vm1007, %v1008, %v983
  %v1010 = vshrl.u32 %v1009, 3
  %v1011 = vand.u32 %v1009, 7
  %v1012 = vsub.s32 0, %v1011
  %v1013 = vsel %vm1007, %v1012, %v1011
  %vm1014 = vcmp.lt.s32.totalorder %v984, 0
  %v1015 = vsub.s32 0, %v984
  %v1016 = vsel %vm1014, %v1015, %v984
  %v1017 = vshrl.u32 %v1016, 3
  %v1018 = vand.u32 %v1016, 7
  %v1019 = vsub.s32 0, %v1018
  %v1020 = vsel %vm1014, %v1019, %v1018
  %vm1021 = vcmp.lt.s32.totalorder %v985, 0
  %v1022 = vsub.s32 0, %v985
  %v1023 = vsel %vm1021, %v1022, %v985
  %v1024 = vshrl.u32 %v1023, 3
  %v1025 = vand.u32 %v1023, 7
  %v1026 = vsub.s32 0, %v1025
  %v1027 = vsel %vm1021, %v1026, %v1025
  %vm1028 = vcmp.ne.s32.totalorder %v992, 0
  %vm1029 = vcmp.ne.s32.totalorder %v999, 0
  %vm1030 = vcmp.ne.s32.totalorder %v1006, 0
  %vm1031 = vcmp.ne.s32.totalorder %v1013, 0
  %vm1032 = vcmp.ne.s32.totalorder %v1020, 0
  %vm1033 = vcmp.ne.s32.totalorder %v1027, 0
  %vm1034 = vcmp.lt.s32.totalorder %v992, 0
  %vm1035 = vcmp.lt.s32.totalorder %v999, 0
  %vm1036 = vcmp.lt.s32.totalorder %v1006, 0
  %vm1037 = vcmp.lt.s32.totalorder %v1013, 0
  %vm1038 = vcmp.lt.s32.totalorder %v1020, 0
  %vm1039 = vcmp.lt.s32.totalorder %v1027, 0
  %vm1040 = vmand %vm1034, %vm1028
  %vm1041 = vmand %vm1035, %vm1029
  %vm1042 = vmand %vm1036, %vm1030
  %vm1043 = vmand %vm1037, %vm1031
  %vm1044 = vmand %vm1038, %vm1032
  %vm1045 = vmand %vm1039, %vm1033
  %v1046 = vadd.s32 %v992, 8
  %v1047 = vadd.s32 %v999, 8
  %v1048 = vadd.s32 %v1006, 8
  %v1049 = vadd.s32 %v1013, 8
  %v1050 = vadd.s32 %v1020, 8
  %v1051 = vadd.s32 %v1027, 8
  %v1052 = vsel %vm1040, %v1046, %v992
  %v1053 = vsel %vm1041, %v1047, %v999
  %v1054 = vsel %vm1042, %v1048, %v1006
  %v1055 = vsel %vm1043, %v1049, %v1013
  %v1056 = vsel %vm1044, %v1050, %v1020
  %v1057 = vsel %vm1045, %v1051, %v1027
  %vm1058 = vcmp.eq.s32.totalorder %v1052, 0
  %vm1059 = vcmp.eq.s32.totalorder %v1053, 0
  %vm1060 = vcmp.eq.s32.totalorder %v1054, 0
  %vm1061 = vcmp.eq.s32.totalorder %v1055, 0
  %vm1062 = vcmp.eq.s32.totalorder %v1056, 0
  %vm1063 = vcmp.eq.s32.totalorder %v1057, 0
  %v1064 = vsel %vm1058, 0.0, %v967
  %v1065 = vsel %vm1058, 0.0, %v968
  %v1066 = vsel %vm1059, 0.0, %v969
  %v1067 = vsel %vm1059, 0.0, %v970
  %v1068 = vsel %vm1060, 0.0, %v971
  %v1069 = vsel %vm1060, 0.0, %v972
  %v1070 = vsel %vm1061, 0.0, %v973
  %v1071 = vsel %vm1061, 0.0, %v974
  %v1072 = vsel %vm1062, 0.0, %v975
  %v1073 = vsel %vm1062, 0.0, %v976
  %v1074 = vsel %vm1063, 0.0, %v977
  %v1075 = vsel %vm1063, 0.0, %v978
  %v1076 = vpack.c.bf16 %v944, %v943
  %v1077 = vpack.c.bf16 %v946, %v945
  %v1078 = vpack.c.bf16 %v948, %v947
  %v1079 = vpack.c.bf16 %v950, %v949
  %v1080 = vpack.c.bf16 %v952, %v951
  %v1081 = vpack.c.bf16 %v954, %v953
  %1082 = vst [vmem:[%s9] sm:$0xff] %v1076
  %1083 = vst [vmem:[%s9 + $0x8] sm:$0xff] %v1077
  %1084 = vst [vmem:[%s9 + $0x10] sm:$0xff] %v1078
  %1085 = vst [vmem:[%s9 + $0x18] sm:$0xff] %v1079
  %1086 = vst [vmem:[%s9 + $0x20] sm:$0xff] %v1080
  %1087 = vst [vmem:[%s9 + $0x28] sm:$0xff] %v1081
  %v1088 = vpack.c.bf16 %v956, %v955
  %v1089 = vpack.c.bf16 %v958, %v957
  %v1090 = vpack.c.bf16 %v960, %v959
  %v1091 = vpack.c.bf16 %v962, %v961
  %v1092 = vpack.c.bf16 %v964, %v963
  %v1093 = vpack.c.bf16 %v966, %v965
  %s1094 = scalar_lea.vmem %s9, 48
  %1095 = vst [vmem:[%s1094] sm:$0xff] %v1088
  %1096 = vst [vmem:[%s1094 + $0x8] sm:$0xff] %v1089
  %1097 = vst [vmem:[%s1094 + $0x10] sm:$0xff] %v1090
  %1098 = vst [vmem:[%s1094 + $0x18] sm:$0xff] %v1091
  %1099 = vst [vmem:[%s1094 + $0x20] sm:$0xff] %v1092
  %1100 = vst [vmem:[%s1094 + $0x28] sm:$0xff] %v1093
  %v1101 = vpack.c.bf16 %v1066, %v1064
  %v1102 = vpack.c.bf16 %v1067, %v1065
  %v1103 = vpack.c.bf16 %v1070, %v1068
  %v1104 = vpack.c.bf16 %v1071, %v1069
  %v1105 = vpack.c.bf16 %v1074, %v1072
  %v1106 = vpack.c.bf16 %v1075, %v1073
  %v1107 = vld [vmem:[%s5] sm:$0xff]
  %v1108 = vld [vmem:[%s5 + $0x8] sm:$0xff]
  %v1109 = vld [vmem:[%s5 + $0x10] sm:$0xff]
  %v1110 = vld [vmem:[%s5 + $0x18] sm:$0xff]
  %v1111 = vld [vmem:[%s5 + $0x20] sm:$0xff]
  %v1112 = vld [vmem:[%s5 + $0x28] sm:$0xff]
  %v1113 = vld [vmem:[%s5 + $0x30] sm:$0xff]
  %v1114 = vld [vmem:[%s5 + $0x38] sm:$0xff]
  %v1115 = vld [vmem:[%s5 + $0x40] sm:$0xff]
  %v1116 = vld [vmem:[%s5 + $0x48] sm:$0xff]
  %v1117 = vld [vmem:[%s5 + $0x50] sm:$0xff]
  %v1118 = vld [vmem:[%s5 + $0x58] sm:$0xff]
  %v1119 = vld [vmem:[%s5 + $0x60] sm:$0xff]
  %v1120 = vld [vmem:[%s5 + $0x68] sm:$0xff]
  %v1121 = vld [vmem:[%s5 + $0x70] sm:$0xff]
  %v1122 = vld [vmem:[%s5 + $0x78] sm:$0xff]
  %v1123 = vld [vmem:[%s5 + $0x80] sm:$0xff]
  %v1124 = vld [vmem:[%s5 + $0x88] sm:$0xff]
  %v1125 = vld [vmem:[%s5 + $0x90] sm:$0xff]
  %v1126 = vld [vmem:[%s5 + $0x98] sm:$0xff]
  %v1127 = vld [vmem:[%s5 + $0xa0] sm:$0xff]
  %v1128 = vld [vmem:[%s5 + $0xa8] sm:$0xff]
  %v1129 = vld [vmem:[%s5 + $0xb0] sm:$0xff]
  %v1130 = vld [vmem:[%s5 + $0xb8] sm:$0xff]
  %v1131 = vld [vmem:[%s5 + $0xc0] sm:$0xff]
  %v1132 = vld [vmem:[%s5 + $0xc8] sm:$0xff]
  %v1133 = vld [vmem:[%s5 + $0xd0] sm:$0xff]
  %v1134 = vld [vmem:[%s5 + $0xd8] sm:$0xff]
  %v1135 = vld [vmem:[%s5 + $0xe0] sm:$0xff]
  %v1136 = vld [vmem:[%s5 + $0xe8] sm:$0xff]
  %v1137 = vld [vmem:[%s5 + $0xf0] sm:$0xff]
  %v1138 = vld [vmem:[%s5 + $0xf8] sm:$0xff]
  %s1139 = scalar_lea.vmem %s5, 256
  %v1140 = vld [vmem:[%s1139] sm:$0xff]
  %v1141 = vld [vmem:[%s1139 + $0x8] sm:$0xff]
  %v1142 = vld [vmem:[%s1139 + $0x10] sm:$0xff]
  %v1143 = vld [vmem:[%s1139 + $0x18] sm:$0xff]
  %v1144 = vld [vmem:[%s1139 + $0x20] sm:$0xff]
  %v1145 = vld [vmem:[%s1139 + $0x28] sm:$0xff]
  %v1146 = vld [vmem:[%s1139 + $0x30] sm:$0xff]
  %v1147 = vld [vmem:[%s1139 + $0x38] sm:$0xff]
  %v1148 = vld [vmem:[%s1139 + $0x40] sm:$0xff]
  %v1149 = vld [vmem:[%s1139 + $0x48] sm:$0xff]
  %v1150 = vld [vmem:[%s1139 + $0x50] sm:$0xff]
  %v1151 = vld [vmem:[%s1139 + $0x58] sm:$0xff]
  %v1152 = vld [vmem:[%s1139 + $0x60] sm:$0xff]
  %v1153 = vld [vmem:[%s1139 + $0x68] sm:$0xff]
  %v1154 = vld [vmem:[%s1139 + $0x70] sm:$0xff]
  %v1155 = vld [vmem:[%s1139 + $0x78] sm:$0xff]
  %v1156 = vld [vmem:[%s1139 + $0x80] sm:$0xff]
  %v1157 = vld [vmem:[%s1139 + $0x88] sm:$0xff]
  %v1158 = vld [vmem:[%s1139 + $0x90] sm:$0xff]
  %v1159 = vld [vmem:[%s1139 + $0x98] sm:$0xff]
  %v1160 = vld [vmem:[%s1139 + $0xa0] sm:$0xff]
  %v1161 = vld [vmem:[%s1139 + $0xa8] sm:$0xff]
  %v1162 = vld [vmem:[%s1139 + $0xb0] sm:$0xff]
  %v1163 = vld [vmem:[%s1139 + $0xb8] sm:$0xff]
  %v1164 = vld [vmem:[%s1139 + $0xc0] sm:$0xff]
  %v1165 = vld [vmem:[%s1139 + $0xc8] sm:$0xff]
  %v1166 = vld [vmem:[%s1139 + $0xd0] sm:$0xff]
  %v1167 = vld [vmem:[%s1139 + $0xd8] sm:$0xff]
  %v1168 = vld [vmem:[%s1139 + $0xe0] sm:$0xff]
  %v1169 = vld [vmem:[%s1139 + $0xe8] sm:$0xff]
  %v1170 = vld [vmem:[%s1139 + $0xf0] sm:$0xff]
  %v1171 = vld [vmem:[%s1139 + $0xf8] sm:$0xff]
  %v1178 = vunpack.c.l.b16 %v1076
  %v1179 = vunpack.c.h.b16 %v1076
  %v1180 = vunpack.c.l.b16 %v1077
  %v1181 = vunpack.c.h.b16 %v1077
  %v1182 = vunpack.c.l.b16 %v1078
  %v1183 = vunpack.c.h.b16 %v1078
  %v1184 = vunpack.c.l.b16 %v1079
  %v1185 = vunpack.c.h.b16 %v1079
  %v1186 = vunpack.c.l.b16 %v1080
  %v1187 = vunpack.c.h.b16 %v1080
  %v1188 = vunpack.c.l.b16 %v1081
  %v1189 = vunpack.c.h.b16 %v1081
  %v1190 = vpack.c.b16 %v1180, %v1178
  %v1191 = vpack.c.b16 %v1181, %v1179
  %v1192 = vpack.c.b16 %v1184, %v1182
  %v1193 = vpack.c.b16 %v1185, %v1183
  %v1194 = vpack.c.b16 %v1188, %v1186
  %v1195 = vpack.c.b16 %v1189, %v1187
  %v1234 = vunpack.c.l.b16 %v1140
  %v1235 = vunpack.c.h.b16 %v1140
  %v1236 = vunpack.c.l.b16 %v1141
  %v1237 = vunpack.c.h.b16 %v1141
  %v1238 = vunpack.c.l.b16 %v1142
  %v1239 = vunpack.c.h.b16 %v1142
  %v1240 = vunpack.c.l.b16 %v1143
  %v1241 = vunpack.c.h.b16 %v1143
  %v1242 = vunpack.c.l.b16 %v1144
  %v1243 = vunpack.c.h.b16 %v1144
  %v1244 = vunpack.c.l.b16 %v1145
  %v1245 = vunpack.c.h.b16 %v1145
  %v1246 = vunpack.c.l.b16 %v1146
  %v1247 = vunpack.c.h.b16 %v1146
  %v1248 = vunpack.c.l.b16 %v1147
  %v1249 = vunpack.c.h.b16 %v1147
  %v1250 = vunpack.c.l.b16 %v1148
  %v1251 = vunpack.c.h.b16 %v1148
  %v1252 = vunpack.c.l.b16 %v1149
  %v1253 = vunpack.c.h.b16 %v1149
  %v1254 = vunpack.c.l.b16 %v1150
  %v1255 = vunpack.c.h.b16 %v1150
  %v1256 = vunpack.c.l.b16 %v1151
  %v1257 = vunpack.c.h.b16 %v1151
  %v1258 = vunpack.c.l.b16 %v1152
  %v1259 = vunpack.c.h.b16 %v1152
  %v1260 = vunpack.c.l.b16 %v1153
  %v1261 = vunpack.c.h.b16 %v1153
  %v1262 = vunpack.c.l.b16 %v1154
  %v1263 = vunpack.c.h.b16 %v1154
  %v1264 = vunpack.c.l.b16 %v1155
  %v1265 = vunpack.c.h.b16 %v1155
  %v1266 = vunpack.c.l.b16 %v1156
  %v1267 = vunpack.c.h.b16 %v1156
  %v1268 = vunpack.c.l.b16 %v1157
  %v1269 = vunpack.c.h.b16 %v1157
  %v1270 = vunpack.c.l.b16 %v1158
  %v1271 = vunpack.c.h.b16 %v1158
  %v1272 = vunpack.c.l.b16 %v1159
  %v1273 = vunpack.c.h.b16 %v1159
  %v1274 = vunpack.c.l.b16 %v1160
  %v1275 = vunpack.c.h.b16 %v1160
  %v1276 = vunpack.c.l.b16 %v1161
  %v1277 = vunpack.c.h.b16 %v1161
  %v1278 = vunpack.c.l.b16 %v1162
  %v1279 = vunpack.c.h.b16 %v1162
  %v1280 = vunpack.c.l.b16 %v1163
  %v1281 = vunpack.c.h.b16 %v1163
  %v1282 = vunpack.c.l.b16 %v1164
  %v1283 = vunpack.c.h.b16 %v1164
  %v1284 = vunpack.c.l.b16 %v1165
  %v1285 = vunpack.c.h.b16 %v1165
  %v1286 = vunpack.c.l.b16 %v1166
  %v1287 = vunpack.c.h.b16 %v1166
  %v1288 = vunpack.c.l.b16 %v1167
  %v1289 = vunpack.c.h.b16 %v1167
  %v1290 = vunpack.c.l.b16 %v1168
  %v1291 = vunpack.c.h.b16 %v1168
  %v1292 = vunpack.c.l.b16 %v1169
  %v1293 = vunpack.c.h.b16 %v1169
  %v1294 = vunpack.c.l.b16 %v1170
  %v1295 = vunpack.c.h.b16 %v1170
  %v1296 = vunpack.c.l.b16 %v1171
  %v1297 = vunpack.c.h.b16 %v1171
  %v1298 = vpack.c.b16 %v1236, %v1234
  %v1299 = vpack.c.b16 %v1237, %v1235
  %v1300 = vpack.c.b16 %v1240, %v1238
  %v1301 = vpack.c.b16 %v1241, %v1239
  %v1302 = vpack.c.b16 %v1244, %v1242
  %v1303 = vpack.c.b16 %v1245, %v1243
  %v1304 = vpack.c.b16 %v1248, %v1246
  %v1305 = vpack.c.b16 %v1249, %v1247
  %v1306 = vpack.c.b16 %v1252, %v1250
  %v1307 = vpack.c.b16 %v1253, %v1251
  %v1308 = vpack.c.b16 %v1256, %v1254
  %v1309 = vpack.c.b16 %v1257, %v1255
  %v1310 = vpack.c.b16 %v1260, %v1258
  %v1311 = vpack.c.b16 %v1261, %v1259
  %v1312 = vpack.c.b16 %v1264, %v1262
  %v1313 = vpack.c.b16 %v1265, %v1263
  %v1314 = vpack.c.b16 %v1268, %v1266
  %v1315 = vpack.c.b16 %v1269, %v1267
  %v1316 = vpack.c.b16 %v1272, %v1270
  %v1317 = vpack.c.b16 %v1273, %v1271
  %v1318 = vpack.c.b16 %v1276, %v1274
  %v1319 = vpack.c.b16 %v1277, %v1275
  %v1320 = vpack.c.b16 %v1280, %v1278
  %v1321 = vpack.c.b16 %v1281, %v1279
  %v1322 = vpack.c.b16 %v1284, %v1282
  %v1323 = vpack.c.b16 %v1285, %v1283
  %v1324 = vpack.c.b16 %v1288, %v1286
  %v1325 = vpack.c.b16 %v1289, %v1287
  %v1326 = vpack.c.b16 %v1292, %v1290
  %v1327 = vpack.c.b16 %v1293, %v1291
  %v1328 = vpack.c.b16 %v1296, %v1294
  %v1329 = vpack.c.b16 %v1297, %v1295
  %1362 = vmatpush.bf16.msra.mxu0 %v1312
  %1363 = vmatpush.bf16.msra.mxu0 %v1310
  %1364 = vmatpush.bf16.msra.mxu0 %v1308
  %1365 = vmatpush.bf16.msra.mxu0 %v1306
  %1366 = vmatpush.bf16.msra.mxu0 %v1304
  %1367 = vmatpush.bf16.msra.mxu0 %v1302
  %1368 = vmatpush.bf16.msra.mxu0 %v1300
  %1369 = vmatpush.bf16.msra.mxu0 %v1298
  %1370 = vmatmul.bf16.gmra.mxu0 %v1190
  %v1371 = vpop.f32.mrf.mxu0
  %v1372 = vadd.f32 0.0, %v1371
  %v1373 = vpop.f32.mrf.mxu0
  %v1374 = vadd.f32 0.0, %v1373
  %1375 = vmatmul.bf16.gmra.mxu0 %v1192
  %v1376 = vpop.f32.mrf.mxu0
  %v1377 = vadd.f32 0.0, %v1376
  %v1378 = vpop.f32.mrf.mxu0
  %v1379 = vadd.f32 0.0, %v1378
  %1380 = vmatmul.bf16.gmra.mxu0 %v1194
  %v1381 = vpop.f32.mrf.mxu0
  %v1382 = vadd.f32 0.0, %v1381
  %v1383 = vpop.f32.mrf.mxu0
  %v1384 = vadd.f32 0.0, %v1383
  %1385 = vdwg.mxu0
  %1386 = vmatpush.bf16.msra.mxu0 %v1328
  %1387 = vmatpush.bf16.msra.mxu0 %v1326
  %1388 = vmatpush.bf16.msra.mxu0 %v1324
  %1389 = vmatpush.bf16.msra.mxu0 %v1322
  %1390 = vmatpush.bf16.msra.mxu0 %v1320
  %1391 = vmatpush.bf16.msra.mxu0 %v1318
  %1392 = vmatpush.bf16.msra.mxu0 %v1316
  %1393 = vmatpush.bf16.msra.mxu0 %v1314
  %1394 = vmatmul.bf16.gmra.mxu0 %v1191
  %v1395 = vpop.f32.mrf.mxu0
  %v1396 = vadd.f32 %v1372, %v1395
  %v1397 = vpop.f32.mrf.mxu0
  %v1398 = vadd.f32 %v1374, %v1397
  %1399 = vmatmul.bf16.gmra.mxu0 %v1193
  %v1400 = vpop.f32.mrf.mxu0
  %v1401 = vadd.f32 %v1377, %v1400
  %v1402 = vpop.f32.mrf.mxu0
  %v1403 = vadd.f32 %v1379, %v1402
  %1404 = vmatmul.bf16.gmra.mxu0 %v1195
  %v1405 = vpop.f32.mrf.mxu0
  %v1406 = vadd.f32 %v1382, %v1405
  %v1407 = vpop.f32.mrf.mxu0
  %v1408 = vadd.f32 %v1384, %v1407
  %1409 = vdwg.mxu0
  %1410 = vmatpush.bf16.msra.mxu0 %v1313
  %1411 = vmatpush.bf16.msra.mxu0 %v1311
  %1412 = vmatpush.bf16.msra.mxu0 %v1309
  %1413 = vmatpush.bf16.msra.mxu0 %v1307
  %1414 = vmatpush.bf16.msra.mxu0 %v1305
  %1415 = vmatpush.bf16.msra.mxu0 %v1303
  %1416 = vmatpush.bf16.msra.mxu0 %v1301
  %1417 = vmatpush.bf16.msra.mxu0 %v1299
  %1418 = vmatmul.bf16.gmra.mxu0 %v1190
  %v1419 = vpop.f32.mrf.mxu0
  %v1420 = vadd.f32 0.0, %v1419
  %v1421 = vpop.f32.mrf.mxu0
  %v1422 = vadd.f32 0.0, %v1421
  %1423 = vmatmul.bf16.gmra.mxu0 %v1192
  %v1424 = vpop.f32.mrf.mxu0
  %v1425 = vadd.f32 0.0, %v1424
  %v1426 = vpop.f32.mrf.mxu0
  %v1427 = vadd.f32 0.0, %v1426
  %1428 = vmatmul.bf16.gmra.mxu0 %v1194
  %v1429 = vpop.f32.mrf.mxu0
  %v1430 = vadd.f32 0.0, %v1429
  %v1431 = vpop.f32.mrf.mxu0
  %v1432 = vadd.f32 0.0, %v1431
  %1433 = vdwg.mxu0
  %1434 = vmatpush.bf16.msra.mxu0 %v1329
  %1435 = vmatpush.bf16.msra.mxu0 %v1327
  %1436 = vmatpush.bf16.msra.mxu0 %v1325
  %1437 = vmatpush.bf16.msra.mxu0 %v1323
  %1438 = vmatpush.bf16.msra.mxu0 %v1321
  %1439 = vmatpush.bf16.msra.mxu0 %v1319
  %1440 = vmatpush.bf16.msra.mxu0 %v1317
  %1441 = vmatpush.bf16.msra.mxu0 %v1315
  %1442 = vmatmul.bf16.gmra.mxu0 %v1191
  %v1443 = vpop.f32.mrf.mxu0
  %v1444 = vadd.f32 %v1420, %v1443
  %v1445 = vpop.f32.mrf.mxu0
  %v1446 = vadd.f32 %v1422, %v1445
  %1447 = vmatmul.bf16.gmra.mxu0 %v1193
  %v1448 = vpop.f32.mrf.mxu0
  %v1449 = vadd.f32 %v1425, %v1448
  %v1450 = vpop.f32.mrf.mxu0
  %v1451 = vadd.f32 %v1427, %v1450
  %1452 = vmatmul.bf16.gmra.mxu0 %v1195
  %v1453 = vpop.f32.mrf.mxu0
  %v1454 = vadd.f32 %v1430, %v1453
  %v1455 = vpop.f32.mrf.mxu0
  %v1456 = vadd.f32 %v1432, %v1455
  %1457 = vdwg.mxu0
  %v1490 = vunpack.c.l.b16 %v1107
  %v1491 = vunpack.c.h.b16 %v1107
  %v1492 = vunpack.c.l.b16 %v1108
  %v1493 = vunpack.c.h.b16 %v1108
  %v1494 = vunpack.c.l.b16 %v1109
  %v1495 = vunpack.c.h.b16 %v1109
  %v1496 = vunpack.c.l.b16 %v1110
  %v1497 = vunpack.c.h.b16 %v1110
  %v1498 = vunpack.c.l.b16 %v1111
  %v1499 = vunpack.c.h.b16 %v1111
  %v1500 = vunpack.c.l.b16 %v1112
  %v1501 = vunpack.c.h.b16 %v1112
  %v1502 = vunpack.c.l.b16 %v1113
  %v1503 = vunpack.c.h.b16 %v1113
  %v1504 = vunpack.c.l.b16 %v1114
  %v1505 = vunpack.c.h.b16 %v1114
  %v1506 = vunpack.c.l.b16 %v1115
  %v1507 = vunpack.c.h.b16 %v1115
  %v1508 = vunpack.c.l.b16 %v1116
  %v1509 = vunpack.c.h.b16 %v1116
  %v1510 = vunpack.c.l.b16 %v1117
  %v1511 = vunpack.c.h.b16 %v1117
  %v1512 = vunpack.c.l.b16 %v1118
  %v1513 = vunpack.c.h.b16 %v1118
  %v1514 = vunpack.c.l.b16 %v1119
  %v1515 = vunpack.c.h.b16 %v1119
  %v1516 = vunpack.c.l.b16 %v1120
  %v1517 = vunpack.c.h.b16 %v1120
  %v1518 = vunpack.c.l.b16 %v1121
  %v1519 = vunpack.c.h.b16 %v1121
  %v1520 = vunpack.c.l.b16 %v1122
  %v1521 = vunpack.c.h.b16 %v1122
  %v1522 = vunpack.c.l.b16 %v1123
  %v1523 = vunpack.c.h.b16 %v1123
  %v1524 = vunpack.c.l.b16 %v1124
  %v1525 = vunpack.c.h.b16 %v1124
  %v1526 = vunpack.c.l.b16 %v1125
  %v1527 = vunpack.c.h.b16 %v1125
  %v1528 = vunpack.c.l.b16 %v1126
  %v1529 = vunpack.c.h.b16 %v1126
  %v1530 = vunpack.c.l.b16 %v1127
  %v1531 = vunpack.c.h.b16 %v1127
  %v1532 = vunpack.c.l.b16 %v1128
  %v1533 = vunpack.c.h.b16 %v1128
  %v1534 = vunpack.c.l.b16 %v1129
  %v1535 = vunpack.c.h.b16 %v1129
  %v1536 = vunpack.c.l.b16 %v1130
  %v1537 = vunpack.c.h.b16 %v1130
  %v1538 = vunpack.c.l.b16 %v1131
  %v1539 = vunpack.c.h.b16 %v1131
  %v1540 = vunpack.c.l.b16 %v1132
  %v1541 = vunpack.c.h.b16 %v1132
  %v1542 = vunpack.c.l.b16 %v1133
  %v1543 = vunpack.c.h.b16 %v1133
  %v1544 = vunpack.c.l.b16 %v1134
  %v1545 = vunpack.c.h.b16 %v1134
  %v1546 = vunpack.c.l.b16 %v1135
  %v1547 = vunpack.c.h.b16 %v1135
  %v1548 = vunpack.c.l.b16 %v1136
  %v1549 = vunpack.c.h.b16 %v1136
  %v1550 = vunpack.c.l.b16 %v1137
  %v1551 = vunpack.c.h.b16 %v1137
  %v1552 = vunpack.c.l.b16 %v1138
  %v1553 = vunpack.c.h.b16 %v1138
  %v1554 = vpack.c.b16 %v1492, %v1490
  %v1555 = vpack.c.b16 %v1493, %v1491
  %v1556 = vpack.c.b16 %v1496, %v1494
  %v1557 = vpack.c.b16 %v1497, %v1495
  %v1558 = vpack.c.b16 %v1500, %v1498
  %v1559 = vpack.c.b16 %v1501, %v1499
  %v1560 = vpack.c.b16 %v1504, %v1502
  %v1561 = vpack.c.b16 %v1505, %v1503
  %v1562 = vpack.c.b16 %v1508, %v1506
  %v1563 = vpack.c.b16 %v1509, %v1507
  %v1564 = vpack.c.b16 %v1512, %v1510
  %v1565 = vpack.c.b16 %v1513, %v1511
  %v1566 = vpack.c.b16 %v1516, %v1514
  %v1567 = vpack.c.b16 %v1517, %v1515
  %v1568 = vpack.c.b16 %v1520, %v1518
  %v1569 = vpack.c.b16 %v1521, %v1519
  %v1570 = vpack.c.b16 %v1524, %v1522
  %v1571 = vpack.c.b16 %v1525, %v1523
  %v1572 = vpack.c.b16 %v1528, %v1526
  %v1573 = vpack.c.b16 %v1529, %v1527
  %v1574 = vpack.c.b16 %v1532, %v1530
  %v1575 = vpack.c.b16 %v1533, %v1531
  %v1576 = vpack.c.b16 %v1536, %v1534
  %v1577 = vpack.c.b16 %v1537, %v1535
  %v1578 = vpack.c.b16 %v1540, %v1538
  %v1579 = vpack.c.b16 %v1541, %v1539
  %v1580 = vpack.c.b16 %v1544, %v1542
  %v1581 = vpack.c.b16 %v1545, %v1543
  %v1582 = vpack.c.b16 %v1548, %v1546
  %v1583 = vpack.c.b16 %v1549, %v1547
  %v1584 = vpack.c.b16 %v1552, %v1550
  %v1585 = vpack.c.b16 %v1553, %v1551
  %1618 = vmatpush.bf16.msra.mxu0 %v1568
  %1619 = vmatpush.bf16.msra.mxu0 %v1566
  %1620 = vmatpush.bf16.msra.mxu0 %v1564
  %1621 = vmatpush.bf16.msra.mxu0 %v1562
  %1622 = vmatpush.bf16.msra.mxu0 %v1560
  %1623 = vmatpush.bf16.msra.mxu0 %v1558
  %1624 = vmatpush.bf16.msra.mxu0 %v1556
  %1625 = vmatpush.bf16.msra.mxu0 %v1554
  %1626 = vmatmul.bf16.gmra.mxu0 %v1101
  %v1627 = vpop.f32.mrf.mxu0
  %v1628 = vadd.f32 %v1396, %v1627
  %v1629 = vpop.f32.mrf.mxu0
  %v1630 = vadd.f32 %v1398, %v1629
  %1631 = vmatmul.bf16.gmra.mxu0 %v1103
  %v1632 = vpop.f32.mrf.mxu0
  %v1633 = vadd.f32 %v1401, %v1632
  %v1634 = vpop.f32.mrf.mxu0
  %v1635 = vadd.f32 %v1403, %v1634
  %1636 = vmatmul.bf16.gmra.mxu0 %v1105
  %v1637 = vpop.f32.mrf.mxu0
  %v1638 = vadd.f32 %v1406, %v1637
  %v1639 = vpop.f32.mrf.mxu0
  %v1640 = vadd.f32 %v1408, %v1639
  %1641 = vdwg.mxu0
  %1642 = vmatpush.bf16.msra.mxu0 %v1584
  %1643 = vmatpush.bf16.msra.mxu0 %v1582
  %1644 = vmatpush.bf16.msra.mxu0 %v1580
  %1645 = vmatpush.bf16.msra.mxu0 %v1578
  %1646 = vmatpush.bf16.msra.mxu0 %v1576
  %1647 = vmatpush.bf16.msra.mxu0 %v1574
  %1648 = vmatpush.bf16.msra.mxu0 %v1572
  %1649 = vmatpush.bf16.msra.mxu0 %v1570
  %1650 = vmatmul.bf16.gmra.mxu0 %v1102
  %v1651 = vpop.f32.mrf.mxu0
  %v1652 = vadd.f32 %v1628, %v1651
  %v1653 = vpop.f32.mrf.mxu0
  %v1654 = vadd.f32 %v1630, %v1653
  %1655 = vmatmul.bf16.gmra.mxu0 %v1104
  %v1656 = vpop.f32.mrf.mxu0
  %v1657 = vadd.f32 %v1633, %v1656
  %v1658 = vpop.f32.mrf.mxu0
  %v1659 = vadd.f32 %v1635, %v1658
  %1660 = vmatmul.bf16.gmra.mxu0 %v1106
  %v1661 = vpop.f32.mrf.mxu0
  %v1662 = vadd.f32 %v1638, %v1661
  %v1663 = vpop.f32.mrf.mxu0
  %v1664 = vadd.f32 %v1640, %v1663
  %1665 = vdwg.mxu0
  %1666 = vmatpush.bf16.msra.mxu0 %v1569
  %1667 = vmatpush.bf16.msra.mxu0 %v1567
  %1668 = vmatpush.bf16.msra.mxu0 %v1565
  %1669 = vmatpush.bf16.msra.mxu0 %v1563
  %1670 = vmatpush.bf16.msra.mxu0 %v1561
  %1671 = vmatpush.bf16.msra.mxu0 %v1559
  %1672 = vmatpush.bf16.msra.mxu0 %v1557
  %1673 = vmatpush.bf16.msra.mxu0 %v1555
  %1674 = vmatmul.bf16.gmra.mxu0 %v1101
  %v1675 = vpop.f32.mrf.mxu0
  %v1676 = vadd.f32 %v1444, %v1675
  %v1677 = vpop.f32.mrf.mxu0
  %v1678 = vadd.f32 %v1446, %v1677
  %1679 = vmatmul.bf16.gmra.mxu0 %v1103
  %v1680 = vpop.f32.mrf.mxu0
  %v1681 = vadd.f32 %v1449, %v1680
  %v1682 = vpop.f32.mrf.mxu0
  %v1683 = vadd.f32 %v1451, %v1682
  %1684 = vmatmul.bf16.gmra.mxu0 %v1105
  %v1685 = vpop.f32.mrf.mxu0
  %v1686 = vadd.f32 %v1454, %v1685
  %v1687 = vpop.f32.mrf.mxu0
  %v1688 = vadd.f32 %v1456, %v1687
  %1689 = vdwg.mxu0
  %1690 = vmatpush.bf16.msra.mxu0 %v1585
  %1691 = vmatpush.bf16.msra.mxu0 %v1583
  %1692 = vmatpush.bf16.msra.mxu0 %v1581
  %1693 = vmatpush.bf16.msra.mxu0 %v1579
  %1694 = vmatpush.bf16.msra.mxu0 %v1577
  %1695 = vmatpush.bf16.msra.mxu0 %v1575
  %1696 = vmatpush.bf16.msra.mxu0 %v1573
  %1697 = vmatpush.bf16.msra.mxu0 %v1571
  %1698 = vmatmul.bf16.gmra.mxu0 %v1102
  %v1699 = vpop.f32.mrf.mxu0
  %v1700 = vadd.f32 %v1676, %v1699
  %v1701 = vpop.f32.mrf.mxu0
  %v1702 = vadd.f32 %v1678, %v1701
  %1703 = vmatmul.bf16.gmra.mxu0 %v1104
  %v1704 = vpop.f32.mrf.mxu0
  %v1705 = vadd.f32 %v1681, %v1704
  %v1706 = vpop.f32.mrf.mxu0
  %v1707 = vadd.f32 %v1683, %v1706
  %1708 = vmatmul.bf16.gmra.mxu0 %v1106
  %v1709 = vpop.f32.mrf.mxu0
  %v1710 = vadd.f32 %v1686, %v1709
  %v1711 = vpop.f32.mrf.mxu0
  %v1712 = vadd.f32 %v1688, %v1711
  %1713 = vdwg.mxu0
  %s1714 = scalar_lea.vmem %s5, 512
  %v1715 = vld [vmem:[%s1714] sm:$0xff]
  %v1716 = vld [vmem:[%s1714 + $0x8] sm:$0xff]
  %v1717 = vld [vmem:[%s1714 + $0x10] sm:$0xff]
  %v1718 = vld [vmem:[%s1714 + $0x18] sm:$0xff]
  %v1719 = vld [vmem:[%s1714 + $0x20] sm:$0xff]
  %v1720 = vld [vmem:[%s1714 + $0x28] sm:$0xff]
  %v1721 = vld [vmem:[%s1714 + $0x30] sm:$0xff]
  %v1722 = vld [vmem:[%s1714 + $0x38] sm:$0xff]
  %v1723 = vld [vmem:[%s1714 + $0x40] sm:$0xff]
  %v1724 = vld [vmem:[%s1714 + $0x48] sm:$0xff]
  %v1725 = vld [vmem:[%s1714 + $0x50] sm:$0xff]
  %v1726 = vld [vmem:[%s1714 + $0x58] sm:$0xff]
  %v1727 = vld [vmem:[%s1714 + $0x60] sm:$0xff]
  %v1728 = vld [vmem:[%s1714 + $0x68] sm:$0xff]
  %v1729 = vld [vmem:[%s1714 + $0x70] sm:$0xff]
  %v1730 = vld [vmem:[%s1714 + $0x78] sm:$0xff]
  %v1731 = vld [vmem:[%s1714 + $0x80] sm:$0xff]
  %v1732 = vld [vmem:[%s1714 + $0x88] sm:$0xff]
  %v1733 = vld [vmem:[%s1714 + $0x90] sm:$0xff]
  %v1734 = vld [vmem:[%s1714 + $0x98] sm:$0xff]
  %v1735 = vld [vmem:[%s1714 + $0xa0] sm:$0xff]
  %v1736 = vld [vmem:[%s1714 + $0xa8] sm:$0xff]
  %v1737 = vld [vmem:[%s1714 + $0xb0] sm:$0xff]
  %v1738 = vld [vmem:[%s1714 + $0xb8] sm:$0xff]
  %v1739 = vld [vmem:[%s1714 + $0xc0] sm:$0xff]
  %v1740 = vld [vmem:[%s1714 + $0xc8] sm:$0xff]
  %v1741 = vld [vmem:[%s1714 + $0xd0] sm:$0xff]
  %v1742 = vld [vmem:[%s1714 + $0xd8] sm:$0xff]
  %v1743 = vld [vmem:[%s1714 + $0xe0] sm:$0xff]
  %v1744 = vld [vmem:[%s1714 + $0xe8] sm:$0xff]
  %v1745 = vld [vmem:[%s1714 + $0xf0] sm:$0xff]
  %v1746 = vld [vmem:[%s1714 + $0xf8] sm:$0xff]
  %v1753 = vunpack.c.l.b16 %v1088
  %v1754 = vunpack.c.h.b16 %v1088
  %v1755 = vunpack.c.l.b16 %v1089
  %v1756 = vunpack.c.h.b16 %v1089
  %v1757 = vunpack.c.l.b16 %v1090
  %v1758 = vunpack.c.h.b16 %v1090
  %v1759 = vunpack.c.l.b16 %v1091
  %v1760 = vunpack.c.h.b16 %v1091
  %v1761 = vunpack.c.l.b16 %v1092
  %v1762 = vunpack.c.h.b16 %v1092
  %v1763 = vunpack.c.l.b16 %v1093
  %v1764 = vunpack.c.h.b16 %v1093
  %v1765 = vpack.c.b16 %v1755, %v1753
  %v1766 = vpack.c.b16 %v1756, %v1754
  %v1767 = vpack.c.b16 %v1759, %v1757
  %v1768 = vpack.c.b16 %v1760, %v1758
  %v1769 = vpack.c.b16 %v1763, %v1761
  %v1770 = vpack.c.b16 %v1764, %v1762
  %v1809 = vunpack.c.l.b16 %v1715
  %v1810 = vunpack.c.h.b16 %v1715
  %v1811 = vunpack.c.l.b16 %v1716
  %v1812 = vunpack.c.h.b16 %v1716
  %v1813 = vunpack.c.l.b16 %v1717
  %v1814 = vunpack.c.h.b16 %v1717
  %v1815 = vunpack.c.l.b16 %v1718
  %v1816 = vunpack.c.h.b16 %v1718
  %v1817 = vunpack.c.l.b16 %v1719
  %v1818 = vunpack.c.h.b16 %v1719
  %v1819 = vunpack.c.l.b16 %v1720
  %v1820 = vunpack.c.h.b16 %v1720
  %v1821 = vunpack.c.l.b16 %v1721
  %v1822 = vunpack.c.h.b16 %v1721
  %v1823 = vunpack.c.l.b16 %v1722
  %v1824 = vunpack.c.h.b16 %v1722
  %v1825 = vunpack.c.l.b16 %v1723
  %v1826 = vunpack.c.h.b16 %v1723
  %v1827 = vunpack.c.l.b16 %v1724
  %v1828 = vunpack.c.h.b16 %v1724
  %v1829 = vunpack.c.l.b16 %v1725
  %v1830 = vunpack.c.h.b16 %v1725
  %v1831 = vunpack.c.l.b16 %v1726
  %v1832 = vunpack.c.h.b16 %v1726
  %v1833 = vunpack.c.l.b16 %v1727
  %v1834 = vunpack.c.h.b16 %v1727
  %v1835 = vunpack.c.l.b16 %v1728
  %v1836 = vunpack.c.h.b16 %v1728
  %v1837 = vunpack.c.l.b16 %v1729
  %v1838 = vunpack.c.h.b16 %v1729
  %v1839 = vunpack.c.l.b16 %v1730
  %v1840 = vunpack.c.h.b16 %v1730
  %v1841 = vunpack.c.l.b16 %v1731
  %v1842 = vunpack.c.h.b16 %v1731
  %v1843 = vunpack.c.l.b16 %v1732
  %v1844 = vunpack.c.h.b16 %v1732
  %v1845 = vunpack.c.l.b16 %v1733
  %v1846 = vunpack.c.h.b16 %v1733
  %v1847 = vunpack.c.l.b16 %v1734
  %v1848 = vunpack.c.h.b16 %v1734
  %v1849 = vunpack.c.l.b16 %v1735
  %v1850 = vunpack.c.h.b16 %v1735
  %v1851 = vunpack.c.l.b16 %v1736
  %v1852 = vunpack.c.h.b16 %v1736
  %v1853 = vunpack.c.l.b16 %v1737
  %v1854 = vunpack.c.h.b16 %v1737
  %v1855 = vunpack.c.l.b16 %v1738
  %v1856 = vunpack.c.h.b16 %v1738
  %v1857 = vunpack.c.l.b16 %v1739
  %v1858 = vunpack.c.h.b16 %v1739
  %v1859 = vunpack.c.l.b16 %v1740
  %v1860 = vunpack.c.h.b16 %v1740
  %v1861 = vunpack.c.l.b16 %v1741
  %v1862 = vunpack.c.h.b16 %v1741
  %v1863 = vunpack.c.l.b16 %v1742
  %v1864 = vunpack.c.h.b16 %v1742
  %v1865 = vunpack.c.l.b16 %v1743
  %v1866 = vunpack.c.h.b16 %v1743
  %v1867 = vunpack.c.l.b16 %v1744
  %v1868 = vunpack.c.h.b16 %v1744
  %v1869 = vunpack.c.l.b16 %v1745
  %v1870 = vunpack.c.h.b16 %v1745
  %v1871 = vunpack.c.l.b16 %v1746
  %v1872 = vunpack.c.h.b16 %v1746
  %v1873 = vpack.c.b16 %v1811, %v1809
  %v1874 = vpack.c.b16 %v1812, %v1810
  %v1875 = vpack.c.b16 %v1815, %v1813
  %v1876 = vpack.c.b16 %v1816, %v1814
  %v1877 = vpack.c.b16 %v1819, %v1817
  %v1878 = vpack.c.b16 %v1820, %v1818
  %v1879 = vpack.c.b16 %v1823, %v1821
  %v1880 = vpack.c.b16 %v1824, %v1822
  %v1881 = vpack.c.b16 %v1827, %v1825
  %v1882 = vpack.c.b16 %v1828, %v1826
  %v1883 = vpack.c.b16 %v1831, %v1829
  %v1884 = vpack.c.b16 %v1832, %v1830
  %v1885 = vpack.c.b16 %v1835, %v1833
  %v1886 = vpack.c.b16 %v1836, %v1834
  %v1887 = vpack.c.b16 %v1839, %v1837
  %v1888 = vpack.c.b16 %v1840, %v1838
  %v1889 = vpack.c.b16 %v1843, %v1841
  %v1890 = vpack.c.b16 %v1844, %v1842
  %v1891 = vpack.c.b16 %v1847, %v1845
  %v1892 = vpack.c.b16 %v1848, %v1846
  %v1893 = vpack.c.b16 %v1851, %v1849
  %v1894 = vpack.c.b16 %v1852, %v1850
  %v1895 = vpack.c.b16 %v1855, %v1853
  %v1896 = vpack.c.b16 %v1856, %v1854
  %v1897 = vpack.c.b16 %v1859, %v1857
  %v1898 = vpack.c.b16 %v1860, %v1858
  %v1899 = vpack.c.b16 %v1863, %v1861
  %v1900 = vpack.c.b16 %v1864, %v1862
  %v1901 = vpack.c.b16 %v1867, %v1865
  %v1902 = vpack.c.b16 %v1868, %v1866
  %v1903 = vpack.c.b16 %v1871, %v1869
  %v1904 = vpack.c.b16 %v1872, %v1870
  %1937 = vmatpush.bf16.msra.mxu0 %v1887
  %1938 = vmatpush.bf16.msra.mxu0 %v1885
  %1939 = vmatpush.bf16.msra.mxu0 %v1883
  %1940 = vmatpush.bf16.msra.mxu0 %v1881
  %1941 = vmatpush.bf16.msra.mxu0 %v1879
  %1942 = vmatpush.bf16.msra.mxu0 %v1877
  %1943 = vmatpush.bf16.msra.mxu0 %v1875
  %1944 = vmatpush.bf16.msra.mxu0 %v1873
  %1945 = vmatmul.bf16.gmra.mxu0 %v1765
  %v1946 = vpop.f32.mrf.mxu0
  %v1947 = vadd.f32 0.0, %v1946
  %v1948 = vpop.f32.mrf.mxu0
  %v1949 = vadd.f32 0.0, %v1948
  %1950 = vmatmul.bf16.gmra.mxu0 %v1767
  %v1951 = vpop.f32.mrf.mxu0
  %v1952 = vadd.f32 0.0, %v1951
  %v1953 = vpop.f32.mrf.mxu0
  %v1954 = vadd.f32 0.0, %v1953
  %1955 = vmatmul.bf16.gmra.mxu0 %v1769
  %v1956 = vpop.f32.mrf.mxu0
  %v1957 = vadd.f32 0.0, %v1956
  %v1958 = vpop.f32.mrf.mxu0
  %v1959 = vadd.f32 0.0, %v1958
  %1960 = vdwg.mxu0
  %1961 = vmatpush.bf16.msra.mxu0 %v1903
  %1962 = vmatpush.bf16.msra.mxu0 %v1901
  %1963 = vmatpush.bf16.msra.mxu0 %v1899
  %1964 = vmatpush.bf16.msra.mxu0 %v1897
  %1965 = vmatpush.bf16.msra.mxu0 %v1895
  %1966 = vmatpush.bf16.msra.mxu0 %v1893
  %1967 = vmatpush.bf16.msra.mxu0 %v1891
  %1968 = vmatpush.bf16.msra.mxu0 %v1889
  %1969 = vmatmul.bf16.gmra.mxu0 %v1766
  %v1970 = vpop.f32.mrf.mxu0
  %v1971 = vadd.f32 %v1947, %v1970
  %v1972 = vpop.f32.mrf.mxu0
  %v1973 = vadd.f32 %v1949, %v1972
  %1974 = vmatmul.bf16.gmra.mxu0 %v1768
  %v1975 = vpop.f32.mrf.mxu0
  %v1976 = vadd.f32 %v1952, %v1975
  %v1977 = vpop.f32.mrf.mxu0
  %v1978 = vadd.f32 %v1954, %v1977
  %1979 = vmatmul.bf16.gmra.mxu0 %v1770
  %v1980 = vpop.f32.mrf.mxu0
  %v1981 = vadd.f32 %v1957, %v1980
  %v1982 = vpop.f32.mrf.mxu0
  %v1983 = vadd.f32 %v1959, %v1982
  %1984 = vdwg.mxu0
  %1985 = vmatpush.bf16.msra.mxu0 %v1888
  %1986 = vmatpush.bf16.msra.mxu0 %v1886
  %1987 = vmatpush.bf16.msra.mxu0 %v1884
  %1988 = vmatpush.bf16.msra.mxu0 %v1882
  %1989 = vmatpush.bf16.msra.mxu0 %v1880
  %1990 = vmatpush.bf16.msra.mxu0 %v1878
  %1991 = vmatpush.bf16.msra.mxu0 %v1876
  %1992 = vmatpush.bf16.msra.mxu0 %v1874
  %1993 = vmatmul.bf16.gmra.mxu0 %v1765
  %v1994 = vpop.f32.mrf.mxu0
  %v1995 = vadd.f32 0.0, %v1994
  %v1996 = vpop.f32.mrf.mxu0
  %v1997 = vadd.f32 0.0, %v1996
  %1998 = vmatmul.bf16.gmra.mxu0 %v1767
  %v1999 = vpop.f32.mrf.mxu0
  %v2000 = vadd.f32 0.0, %v1999
  %v2001 = vpop.f32.mrf.mxu0
  %v2002 = vadd.f32 0.0, %v2001
  %2003 = vmatmul.bf16.gmra.mxu0 %v1769
  %v2004 = vpop.f32.mrf.mxu0
  %v2005 = vadd.f32 0.0, %v2004
  %v2006 = vpop.f32.mrf.mxu0
  %v2007 = vadd.f32 0.0, %v2006
  %2008 = vdwg.mxu0
  %2009 = vmatpush.bf16.msra.mxu0 %v1904
  %2010 = vmatpush.bf16.msra.mxu0 %v1902
  %2011 = vmatpush.bf16.msra.mxu0 %v1900
  %2012 = vmatpush.bf16.msra.mxu0 %v1898
  %2013 = vmatpush.bf16.msra.mxu0 %v1896
  %2014 = vmatpush.bf16.msra.mxu0 %v1894
  %2015 = vmatpush.bf16.msra.mxu0 %v1892
  %2016 = vmatpush.bf16.msra.mxu0 %v1890
  %2017 = vmatmul.bf16.gmra.mxu0 %v1766
  %v2018 = vpop.f32.mrf.mxu0
  %v2019 = vadd.f32 %v1995, %v2018
  %v2020 = vpop.f32.mrf.mxu0
  %v2021 = vadd.f32 %v1997, %v2020
  %2022 = vmatmul.bf16.gmra.mxu0 %v1768
  %v2023 = vpop.f32.mrf.mxu0
  %v2024 = vadd.f32 %v2000, %v2023
  %v2025 = vpop.f32.mrf.mxu0
  %v2026 = vadd.f32 %v2002, %v2025
  %2027 = vmatmul.bf16.gmra.mxu0 %v1770
  %v2028 = vpop.f32.mrf.mxu0
  %v2029 = vadd.f32 %v2005, %v2028
  %v2030 = vpop.f32.mrf.mxu0
  %v2031 = vadd.f32 %v2007, %v2030
  %2032 = vdwg.mxu0
  %v2033 = vadd.f32 %v1652, %v1971
  %v2034 = vadd.f32 %v1700, %v2019
  %v2035 = vadd.f32 %v1654, %v1973
  %v2036 = vadd.f32 %v1702, %v2021
  %v2037 = vadd.f32 %v1657, %v1976
  %v2038 = vadd.f32 %v1705, %v2024
  %v2039 = vadd.f32 %v1659, %v1978
  %v2040 = vadd.f32 %v1707, %v2026
  %v2041 = vadd.f32 %v1662, %v1981
  %v2042 = vadd.f32 %v1710, %v2029
  %v2043 = vadd.f32 %v1664, %v1983
  %v2044 = vadd.f32 %v1712, %v2031
  %v2045 = vld [vmem:[%s6] sm:$0x3]
  %v2047 = vperm.slane %v2045, 0
  %v2048 = vperm.slane %v2045, 1
  %v2051 = vadd.f32 %v2033, %v2047
  %v2052 = vadd.f32 %v2034, %v2048
  %v2053 = vadd.f32 %v2035, %v2047
  %v2054 = vadd.f32 %v2036, %v2048
  %v2055 = vadd.f32 %v2037, %v2047
  %v2056 = vadd.f32 %v2038, %v2048
  %v2057 = vadd.f32 %v2039, %v2047
  %v2058 = vadd.f32 %v2040, %v2048
  %v2059 = vadd.f32 %v2041, %v2047
  %v2060 = vadd.f32 %v2042, %v2048
  %v2061 = vadd.f32 %v2043, %v2047
  %v2062 = vadd.f32 %v2044, %v2048
  %v2063 = vmax.f32 %v2051, 0.0
  %v2064 = vmax.f32 %v2052, 0.0
  %v2065 = vmax.f32 %v2053, 0.0
  %v2066 = vmax.f32 %v2054, 0.0
  %v2067 = vmax.f32 %v2055, 0.0
  %v2068 = vmax.f32 %v2056, 0.0
  %v2069 = vmax.f32 %v2057, 0.0
  %v2070 = vmax.f32 %v2058, 0.0
  %v2071 = vmax.f32 %v2059, 0.0
  %v2072 = vmax.f32 %v2060, 0.0
  %v2073 = vmax.f32 %v2061, 0.0
  %v2074 = vmax.f32 %v2062, 0.0
  %v2075 = vpack.c.bf16 %v2064, %v2063
  %v2076 = vpack.c.bf16 %v2066, %v2065
  %v2077 = vpack.c.bf16 %v2068, %v2067
  %v2078 = vpack.c.bf16 %v2070, %v2069
  %v2079 = vpack.c.bf16 %v2072, %v2071
  %v2080 = vpack.c.bf16 %v2074, %v2073
  %2081 = vst [vmem:[%s10] sm:$0xff] %v2075
  %2082 = vst [vmem:[%s10 + $0x8] sm:$0xff] %v2076
  %2083 = vst [vmem:[%s10 + $0x10] sm:$0xff] %v2077
  %2084 = vst [vmem:[%s10 + $0x18] sm:$0xff] %v2078
  %2085 = vst [vmem:[%s10 + $0x20] sm:$0xff] %v2079
  %2086 = vst [vmem:[%s10 + $0x28] sm:$0xff] %v2080
  %v2087 = vld [vmem:[%s7] sm:$0xf]
  %v2088 = vld [vmem:[%s7 + $0x4] sm:$0xf]
  %v2089 = vld [vmem:[%s7 + $0x8] sm:$0xf]
  %v2090 = vld [vmem:[%s7 + $0xc] sm:$0xf]
  %v2091 = vld [vmem:[%s7 + $0x10] sm:$0xf]
  %v2092 = vld [vmem:[%s7 + $0x14] sm:$0xf]
  %v2093 = vld [vmem:[%s7 + $0x18] sm:$0xf]
  %v2094 = vld [vmem:[%s7 + $0x1c] sm:$0xf]
  %v2095 = vld [vmem:[%s7 + $0x20] sm:$0xf]
  %v2096 = vld [vmem:[%s7 + $0x24] sm:$0xf]
  %v2097 = vld [vmem:[%s7 + $0x28] sm:$0xf]
  %v2098 = vld [vmem:[%s7 + $0x2c] sm:$0xf]
  %v2099 = vld [vmem:[%s7 + $0x30] sm:$0xf]
  %v2100 = vld [vmem:[%s7 + $0x34] sm:$0xf]
  %v2101 = vld [vmem:[%s7 + $0x38] sm:$0xf]
  %v2102 = vld [vmem:[%s7 + $0x3c] sm:$0xf]
  %v2103 = vld [vmem:[%s7 + $0x40] sm:$0xf]
  %v2104 = vld [vmem:[%s7 + $0x44] sm:$0xf]
  %v2105 = vld [vmem:[%s7 + $0x48] sm:$0xf]
  %v2106 = vld [vmem:[%s7 + $0x4c] sm:$0xf]
  %v2107 = vld [vmem:[%s7 + $0x50] sm:$0xf]
  %v2108 = vld [vmem:[%s7 + $0x54] sm:$0xf]
  %v2109 = vld [vmem:[%s7 + $0x58] sm:$0xf]
  %v2110 = vld [vmem:[%s7 + $0x5c] sm:$0xf]
  %v2111 = vld [vmem:[%s7 + $0x60] sm:$0xf]
  %v2112 = vld [vmem:[%s7 + $0x64] sm:$0xf]
  %v2113 = vld [vmem:[%s7 + $0x68] sm:$0xf]
  %v2114 = vld [vmem:[%s7 + $0x6c] sm:$0xf]
  %v2115 = vld [vmem:[%s7 + $0x70] sm:$0xf]
  %v2116 = vld [vmem:[%s7 + $0x74] sm:$0xf]
  %v2117 = vld [vmem:[%s7 + $0x78] sm:$0xf]
  %v2118 = vld [vmem:[%s7 + $0x7c] sm:$0xf]
  %v2119 = vld [vmem:[%s8] sm:$0x1]
  %v2121 = vperm.slane %v2119, 0
  %v2129 = vunpack.c.l.b16 %v2075
  %v2130 = vunpack.c.h.b16 %v2075
  %v2131 = vunpack.c.l.b16 %v2076
  %v2132 = vunpack.c.h.b16 %v2076
  %v2133 = vunpack.c.l.b16 %v2077
  %v2134 = vunpack.c.h.b16 %v2077
  %v2135 = vunpack.c.l.b16 %v2078
  %v2136 = vunpack.c.h.b16 %v2078
  %v2137 = vunpack.c.l.b16 %v2079
  %v2138 = vunpack.c.h.b16 %v2079
  %v2139 = vunpack.c.l.b16 %v2080
  %v2140 = vunpack.c.h.b16 %v2080
  %v2141 = vpack.c.b16 %v2131, %v2129
  %v2142 = vpack.c.b16 %v2132, %v2130
  %v2143 = vpack.c.b16 %v2135, %v2133
  %v2144 = vpack.c.b16 %v2136, %v2134
  %v2145 = vpack.c.b16 %v2139, %v2137
  %v2146 = vpack.c.b16 %v2140, %v2138
  %v2185 = vunpack.c.l.b16 %v2087
  %v2186 = vunpack.c.l.b16 %v2088
  %v2187 = vunpack.c.l.b16 %v2089
  %v2188 = vunpack.c.l.b16 %v2090
  %v2189 = vunpack.c.l.b16 %v2091
  %v2190 = vunpack.c.l.b16 %v2092
  %v2191 = vunpack.c.l.b16 %v2093
  %v2192 = vunpack.c.l.b16 %v2094
  %v2193 = vunpack.c.l.b16 %v2095
  %v2194 = vunpack.c.l.b16 %v2096
  %v2195 = vunpack.c.l.b16 %v2097
  %v2196 = vunpack.c.l.b16 %v2098
  %v2197 = vunpack.c.l.b16 %v2099
  %v2198 = vunpack.c.l.b16 %v2100
  %v2199 = vunpack.c.l.b16 %v2101
  %v2200 = vunpack.c.l.b16 %v2102
  %v2201 = vunpack.c.l.b16 %v2103
  %v2202 = vunpack.c.l.b16 %v2104
  %v2203 = vunpack.c.l.b16 %v2105
  %v2204 = vunpack.c.l.b16 %v2106
  %v2205 = vunpack.c.l.b16 %v2107
  %v2206 = vunpack.c.l.b16 %v2108
  %v2207 = vunpack.c.l.b16 %v2109
  %v2208 = vunpack.c.l.b16 %v2110
  %v2209 = vunpack.c.l.b16 %v2111
  %v2210 = vunpack.c.l.b16 %v2112
  %v2211 = vunpack.c.l.b16 %v2113
  %v2212 = vunpack.c.l.b16 %v2114
  %v2213 = vunpack.c.l.b16 %v2115
  %v2214 = vunpack.c.l.b16 %v2116
  %v2215 = vunpack.c.l.b16 %v2117
  %v2216 = vunpack.c.l.b16 %v2118
  %v2217 = vpack.c.b16 %v2186, %v2185
  %v2218 = vpack.c.b16 %v2188, %v2187
  %v2219 = vpack.c.b16 %v2190, %v2189
  %v2220 = vpack.c.b16 %v2192, %v2191
  %v2221 = vpack.c.b16 %v2194, %v2193
  %v2222 = vpack.c.b16 %v2196, %v2195
  %v2223 = vpack.c.b16 %v2198, %v2197
  %v2224 = vpack.c.b16 %v2200, %v2199
  %v2225 = vpack.c.b16 %v2202, %v2201
  %v2226 = vpack.c.b16 %v2204, %v2203
  %v2227 = vpack.c.b16 %v2206, %v2205
  %v2228 = vpack.c.b16 %v2208, %v2207
  %v2229 = vpack.c.b16 %v2210, %v2209
  %v2230 = vpack.c.b16 %v2212, %v2211
  %v2231 = vpack.c.b16 %v2214, %v2213
  %v2232 = vpack.c.b16 %v2216, %v2215
  %2249 = vmatpush.bf16.msra.mxu0 %v2224
  %2250 = vmatpush.bf16.msra.mxu0 %v2223
  %2251 = vmatpush.bf16.msra.mxu0 %v2222
  %2252 = vmatpush.bf16.msra.mxu0 %v2221
  %2253 = vmatpush.bf16.msra.mxu0 %v2220
  %2254 = vmatpush.bf16.msra.mxu0 %v2219
  %2255 = vmatpush.bf16.msra.mxu0 %v2218
  %2256 = vmatpush.bf16.msra.mxu0 %v2217
  %2257 = vmatmul.bf16.gmra.mxu0 %v2141
  %v2258 = vpop.f32.mrf.mxu0
  %v2259 = vadd.f32 %v2121, %v2258
  %v2260 = vpop.f32.mrf.mxu0
  %v2261 = vadd.f32 %v2121, %v2260
  %2262 = vmatmul.bf16.gmra.mxu0 %v2143
  %v2263 = vpop.f32.mrf.mxu0
  %v2264 = vadd.f32 %v2121, %v2263
  %v2265 = vpop.f32.mrf.mxu0
  %v2266 = vadd.f32 %v2121, %v2265
  %2267 = vmatmul.bf16.gmra.mxu0 %v2145
  %v2268 = vpop.f32.mrf.mxu0
  %v2269 = vadd.f32 %v2121, %v2268
  %v2270 = vpop.f32.mrf.mxu0
  %v2271 = vadd.f32 %v2121, %v2270
  %2272 = vdwg.mxu0
  %2273 = vmatpush.bf16.msra.mxu0 %v2232
  %2274 = vmatpush.bf16.msra.mxu0 %v2231
  %2275 = vmatpush.bf16.msra.mxu0 %v2230
  %2276 = vmatpush.bf16.msra.mxu0 %v2229
  %2277 = vmatpush.bf16.msra.mxu0 %v2228
  %2278 = vmatpush.bf16.msra.mxu0 %v2227
  %2279 = vmatpush.bf16.msra.mxu0 %v2226
  %2280 = vmatpush.bf16.msra.mxu0 %v2225
  %2281 = vmatmul.bf16.gmra.mxu0 %v2142
  %v2282 = vpop.f32.mrf.mxu0
  %v2283 = vadd.f32 %v2259, %v2282
  %v2284 = vpop.f32.mrf.mxu0
  %v2285 = vadd.f32 %v2261, %v2284
  %2286 = vmatmul.bf16.gmra.mxu0 %v2144
  %v2287 = vpop.f32.mrf.mxu0
  %v2288 = vadd.f32 %v2264, %v2287
  %v2289 = vpop.f32.mrf.mxu0
  %v2290 = vadd.f32 %v2266, %v2289
  %2291 = vmatmul.bf16.gmra.mxu0 %v2146
  %v2292 = vpop.f32.mrf.mxu0
  %v2293 = vadd.f32 %v2269, %v2292
  %v2294 = vpop.f32.mrf.mxu0
  %v2295 = vadd.f32 %v2271, %v2294
  %2296 = vdwg.mxu0
  %v2297 = vmax.f32 %v2283, 0.0
  %v2298 = vmax.f32 %v2285, 0.0
  %v2299 = vmax.f32 %v2288, 0.0
  %v2300 = vmax.f32 %v2290, 0.0
  %v2301 = vmax.f32 %v2293, 0.0
  %v2302 = vmax.f32 %v2295, 0.0
  %2303 = vst [vmem:[%s11] sm:$0xff] %v2297
  %2304 = vst [vmem:[%s11 + $0x8] sm:$0xff] %v2298
  %2305 = vst [vmem:[%s11 + $0x10] sm:$0xff] %v2299
  %2306 = vst [vmem:[%s11 + $0x18] sm:$0xff] %v2300
  %2307 = vst [vmem:[%s11 + $0x20] sm:$0xff] %v2301
  %2308 = vst [vmem:[%s11 + $0x28] sm:$0xff] %v2302
  // Predicated region
  $region38: #{_forward_features.1} parent=0 // pred_check
    _
  $region39: #{_forward_features.1} parent=0 // pred_check_branch
    %2310 = sbr.rel (0) target = $region41
  $region40: #{_forward_features.1} parent=0 // pred_region
    _
  $region41: #{_forward_features.1} parent=0 // pred_fallthru
    _
  // Predicated region
  $region42: #{_forward_features.1} parent=0 // pred_check
    _
  $region43: #{_forward_features.1} parent=0 // pred_check_branch
    %2312 = sbr.rel (0) target = $region45
  $region44: #{_forward_features.1} parent=0 // pred_region
    _
  $region45: #{_forward_features.1} parent=0 // pred_fallthru
    _
  // Predicated region
  $region46: #{_forward_features.1} parent=0 // pred_check
    _
  $region47: #{_forward_features.1} parent=0 // pred_check_branch
    %2314 = sbr.rel (0) target = $region49
  $region48: #{_forward_features.1} parent=0 // pred_region
    _
  $region49: #{_forward_features.1} parent=0 // pred_fallthru
    _
  // Predicated region
  $region50: #{_forward_features.1} parent=0 // pred_check
    _
  $region51: #{_forward_features.1} parent=0 // pred_check_branch
    %2316 = sbr.rel (0) target = $region53
  $region52: #{_forward_features.1} parent=0 // pred_region
    _
  $region53: #{_forward_features.1} parent=0 // pred_fallthru
    _
  // Predicated region
  $region54: #{_forward_features.1} parent=0 // pred_check
    _
  $region55: #{_forward_features.1} parent=0 // pred_check_branch
    %2318 = sbr.rel (0) target = $region57
  $region56: #{_forward_features.1} parent=0 // pred_region
    _
  $region57: #{_forward_features.1} parent=0 // pred_fallthru
    _
  // Predicated region
  $region58: #{_forward_features.1} parent=0 // pred_check
    _
  $region59: #{_forward_features.1} parent=0 // pred_check_branch
    %2320 = sbr.rel (0) target = $region61
  $region60: #{_forward_features.1} parent=0 // pred_region
    _
  $region61: #{_forward_features.1} parent=0 // pred_fallthru
    _

</llo_original>
